<compile_context>
chip_gen: v7x
topology: tpu7x:2x2x1
jax: 0.10.0
libtpu: 0.0.40
codegen_flags: <defaults>
</compile_context>

<pallas_src>
import jax
import jax.numpy as jnp
from jax import lax
from jax.experimental import pallas as pl
from jax.experimental.pallas import tpu as pltpu


_LANE = 128
_SUBLANE = 8
_F_CHUNK = 512                       # lanes per reduction chunk for large F
_DEFAULT_VMEM_BUDGET = 24 << 20      # target resident VMEM (x stream + temps + out)
_VMEM_LIMIT_CAP = 48 << 20           # stay well below v7x's 64 MiB / TC


def _round_up(a, b):
    return (a + b - 1) // b * b


def _make_logreg_kernel(f, tn, chunk=_F_CHUNK):
    """Build the kernel for static feature count `f` and row tile `tn`."""
    n_full = f // chunk
    rem = f - n_full * chunk
    chunked = f > chunk

    def kernel(x_ref, w_ref, b_ref, o_ref):
        # x_ref: (tn, f) VMEM (input dtype), w_ref: (1, f) f32 VMEM,
        # b_ref: (1,) f32 SMEM, o_ref: (1, tn) f32 VMEM (lane-dense).
        if not chunked:
            # Small F: one VPU multiply + one XLU cross-lane reduce.
            x = x_ref[...].astype(jnp.float32)            # bf16 upcast in-register
            z = jnp.sum(x * w_ref[...], axis=-1)          # (tn,)
        else:
            # Large F: chunked multiply-accumulate so the full (tn, F) product
            # is never materialized (would spill to a tile-sized VMEM temp).
            def body(c, acc):
                start = pl.multiple_of(c * chunk, chunk)
                xc = x_ref[:, pl.ds(start, chunk)].astype(jnp.float32)
                wc = w_ref[:, pl.ds(start, chunk)]
                return acc + jnp.sum(xc * wc, axis=-1)

            z = lax.fori_loop(0, n_full, body,
                              jnp.zeros((tn,), jnp.float32), unroll=True)
            if rem:
                start = n_full * chunk
                xc = x_ref[:, pl.ds(start, rem)].astype(jnp.float32)
                wc = w_ref[:, pl.ds(start, rem)]
                z = z + jnp.sum(xc * wc, axis=-1)

        z = z + b_ref[0]                                  # SMEM scalar bias
        o_ref[...] = jax.nn.sigmoid(z)[None, :].astype(o_ref.dtype)  # EUP exp

    return kernel


def logistic_regression_forward(x, weight, bias, *, rows_per_tile=None,
                                vmem_budget_bytes=_DEFAULT_VMEM_BUDGET):
    """sigmoid(x @ weight.T + bias) -> [N, 1] float32.

    x: [N, F] (f32 or bf16; bf16 is NOT upcast in the wrapper -- it is streamed
       at half the HBM bytes and upcast in-register inside the kernel),
    weight: [1, F] (torch nn.Linear layout), bias: [1].
    """
    n, f = x.shape
    w_row = weight.reshape(1, f).astype(jnp.float32)      # lane-dense weight row
    b = bias.reshape(1).astype(jnp.float32)               # SMEM scalar

    itemsize_x = jnp.dtype(x.dtype).itemsize
    f_lanes = _round_up(f, _LANE)                         # VMEM lane footprint of a row
    chunk_lanes = min(f_lanes, _F_CHUNK)

    # Per-row resident VMEM cost: double-buffered x block (incl. lane padding),
    # f32 upcast/product temporaries, double-buffered (1, tn) output row.
    cost_per_row = (2 * f_lanes * itemsize_x
                    + 2 * chunk_lanes * 4
                    + 2 * _SUBLANE * 4)

    budget = min(vmem_budget_bytes, 40 << 20)             # per-TC budget (v7x: 64 MiB VMEM/TC)
    tn_budget = max(_LANE, (budget // cost_per_row) // _LANE * _LANE)
    if rows_per_tile is not None:
        tn = max(_LANE, rows_per_tile // _LANE * _LANE)
        tn = min(tn, tn_budget)
    else:
        tn = tn_budget
    tn = min(tn, _round_up(n, _LANE))                     # don't tile past the batch

    # Partial tail block instead of a wrapper-side jnp.pad copy: OOB tail rows
    # read unspecified values, and the matching output lanes are masked.
    grid = (pl.cdiv(n, tn),)

    vmem_est = (2 * tn * f_lanes * itemsize_x             # x double buffer
                + 2 * f_lanes * 4                         # weight row buffers
                + 2 * tn * chunk_lanes * 4                # in-kernel f32 temporaries
                + 2 * _SUBLANE * tn * 4)                  # output row buffers
    vmem_limit = min(max(int(vmem_est * 1.3) + (4 << 20), 32 << 20), _VMEM_LIMIT_CAP)

    kernel = _make_logreg_kernel(f, tn)

    out_row = pl.pallas_call(
        kernel,
        out_shape=jax.ShapeDtypeStruct((1, n), jnp.float32),
        grid_spec=pltpu.PrefetchScalarGridSpec(
            num_scalar_prefetch=0,
            grid=grid,
            in_specs=[
                pl.BlockSpec((tn, f), lambda i: (i, 0)),   # streamed, double-buffered x
                # Weight row is VMEM-resident (constant block index); a single
                # buffer would save only f_lanes*4 bytes, so the default
                # double-buffering is kept for portability.
                pl.BlockSpec((1, f), lambda i: (0, 0)),
                pl.BlockSpec(memory_space=pltpu.MemorySpace.SMEM),  # bias scalar
            ],
            out_specs=pl.BlockSpec((1, tn), lambda i: (0, i)),      # lane-dense output
        ),
        compiler_params=pltpu.CompilerParams(
            dimension_semantics=("parallel",),             # row tiles independent -> 2 TCs on v7x
            vmem_limit_bytes=vmem_limit),
        cost_estimate=pl.CostEstimate(
            flops=2 * n * f,
            transcendentals=n,
            bytes_accessed=n * f * itemsize_x + f * 4 + n * 4),
    )(x, w_row, b)

    return out_row.reshape(n, 1)


if __name__ == "__main__":
    # Small shapes consistent with the module: batch=256, n_input_features=32.
    n_samples, n_features = 256, 32

    key = jax.random.PRNGKey(0)
    k_x, k_w, k_b = jax.random.split(key, 3)

    x = jax.random.normal(k_x, (n_samples, n_features), dtype=jnp.float32)

    # Deterministic init mimicking nn.Linear default: U(-1/sqrt(F), 1/sqrt(F)).
    bound = 1.0 / (n_features ** 0.5)
    weight = jax.random.uniform(k_w, (1, n_features),
                                minval=-bound, maxval=bound, dtype=jnp.float32)
    bias = jax.random.uniform(k_b, (1,),
                              minval=-bound, maxval=bound, dtype=jnp.float32)

    # Reference in plain JAX (same semantics as torch.sigmoid(linear(x))).
    y_ref = jax.nn.sigmoid(x @ weight.T + bias)

    # 1) Default byte-sized tiling (single-block path for this small batch).
    y_pred = logistic_regression_forward(x, weight, bias)
    y_pred = jax.block_until_ready(y_pred)
    assert y_pred.shape == (n_samples, 1)
    assert jnp.allclose(y_pred, y_ref, atol=1e-5, rtol=1e-5), "mismatch vs reference"

    # 2) Tiled path with a partial tail block (n=200 not a multiple of 128),
    #    exercising the no-pad cdiv grid and masked output stores.
    y_tail = logistic_regression_forward(x[:200], weight, bias, rows_per_tile=128)
    y_tail = jax.block_until_ready(y_tail)
    assert jnp.allclose(y_tail, y_ref[:200], atol=1e-5, rtol=1e-5), "partial-tail mismatch"

    # 3) bf16 activations streamed at half the HBM bytes, upcast in-kernel.
    x_bf16 = x.astype(jnp.bfloat16)
    y_bf16 = logistic_regression_forward(x_bf16, weight, bias)
    y_bf16 = jax.block_until_ready(y_bf16)
    y_ref_bf16 = jax.nn.sigmoid(x_bf16.astype(jnp.float32) @ weight.T + bias)
    assert jnp.allclose(y_bf16, y_ref_bf16, atol=1e-4, rtol=1e-4), "bf16 mismatch"

    print("KERNEL_OK")
</pallas_src>

<mosaic_0001>
module attributes {stable_mosaic.version = 11 : i64} {
  func.func @kernel(%arg0: i32, %arg1: memref<256x32xf32, #tpu.memory_space<vmem>>, %arg2: memref<1x32xf32, #tpu.memory_space<vmem>>, %arg3: memref<1xf32, #tpu.memory_space<smem>>, %arg4: memref<1x256xf32, #tpu.memory_space<vmem>>) attributes {dimension_semantics = [#tpu.dimension_semantics<parallel>], iteration_bounds = array<i64: 1>, scalar_prefetch = 0 : i64, scratch_operands = 0 : i64, tpu.core_type = #tpu.core_type<tc>, window_params = [{transform_indices = @transform_0, window_bounds = array<i64: 256, 32>}, {pipeline_mode = #tpu.pipeline_mode<synchronous>, transform_indices = @transform_1, window_bounds = array<i64: 1, 32>}, {transform_indices = @transform_2, window_bounds = array<i64: 1>}, {transform_indices = @transform_3, window_bounds = array<i64: 1, 256>}]} {
    %c0 = arith.constant 0 : index
    %c0_0 = arith.constant 0 : index
    %0 = vector.load %arg1[%c0, %c0_0] : memref<256x32xf32, #tpu.memory_space<vmem>>, vector<256x32xf32>
    %c0_1 = arith.constant 0 : index
    %c0_2 = arith.constant 0 : index
    %1 = vector.load %arg2[%c0_1, %c0_2] : memref<1x32xf32, #tpu.memory_space<vmem>>, vector<1x32xf32>
    %2 = vector.broadcast %1 : vector<1x32xf32> to vector<256x32xf32>
    %3 = arith.mulf %0, %2 : vector<256x32xf32>
    %cst = arith.constant dense<0.000000e+00> : vector<256xf32>
    %4 = vector.multi_reduction <add>, %3, %cst [1] : vector<256x32xf32> to vector<256xf32>
    %c0_3 = arith.constant 0 : index
    %5 = memref.load %arg3[%c0_3] : memref<1xf32, #tpu.memory_space<smem>>
    %6 = vector.broadcast %5 : f32 to vector<256xf32>
    %7 = arith.addf %4, %6 : vector<256xf32>
    %8 = arith.negf %7 : vector<256xf32>
    %9 = math.exp %8 : vector<256xf32>
    %cst_4 = arith.constant 1.000000e+00 : f32
    %10 = vector.broadcast %cst_4 : f32 to vector<256xf32>
    %11 = arith.addf %10, %9 : vector<256xf32>
    %12 = arith.divf %10, %11 : vector<256xf32>
    %13 = vector.shape_cast %12 : vector<256xf32> to vector<1x256xf32>
    %c0_5 = arith.constant 0 : index
    %c0_6 = arith.constant 0 : index
    %14 = vector.load %arg4[%c0_5, %c0_6] : memref<1x256xf32, #tpu.memory_space<vmem>>, vector<1x256xf32>
    tpu.vector_store %arg4[%c0_5, %c0_6], %13 {strides = array<i32>} : memref<1x256xf32, #tpu.memory_space<vmem>>, vector<1x256xf32>,
    return
  }
  func.func @transform_0(%arg0: i32) -> (i32, i32) {
    %c0_i32 = arith.constant 0 : i32
    %c0_i32_0 = arith.constant 0 : i32
    return %arg0, %c0_i32 : i32, i32
  }
  func.func @transform_1(%arg0: i32) -> (i32, i32) {
    %c0_i32 = arith.constant 0 : i32
    %c0_i32_0 = arith.constant 0 : i32
    %c0_i32_1 = arith.constant 0 : i32
    return %c0_i32, %c0_i32_0 : i32, i32
  }
  func.func @transform_2(%arg0: i32) -> i32 {
    %c0_i32 = arith.constant 0 : i32
    %c0_i32_0 = arith.constant 0 : i32
    return %c0_i32 : i32
  }
  func.func @transform_3(%arg0: i32) -> (i32, i32) {
    %c0_i32 = arith.constant 0 : i32
    %c0_i32_0 = arith.constant 0 : i32
    return %c0_i32, %arg0 : i32, i32
  }
}

</mosaic_0001>

<llo_original>
// kernel: tpu_custom_call.1
$region0: #{tpu_custom_call.1}
  #allocation0 [shape = 'u32[]', space=smem, size = 0x4, offset = 0x4, fixed_abs, tag = 'smem constant byte address 0x4 - core index']
  #allocation1 [shape = 'u32[144,128]{1,0:T(1,128)}', space=vmem, size = 0x12000, scoped, tag = 'internal scratch']
  #allocation2 [shape = 'f32[1]{0:T(128)S(6)}', space=smem, size = 0x200, scoped, tag = 'scoped memory for tpu_custom_call.1']
  %s0 = inlined_call_operand.vmem [shape: f32[256,32], index: 0, kind: input, shape index: {}]
  %s1 = inlined_call_operand.vmem [shape: f32[1,32], index: 1, kind: input, shape index: {}]
  %s2 = inlined_call_operand.<no memory space> [shape: f32[1], index: 2, kind: input, shape index: {}]
  %s3 = inlined_call_operand.hbm [shape: f32[1,256], index: 3, kind: output, shape index: {}]
  %s4 = sld [smem:[#allocation0]]
  $region22: #{tpu_custom_call.1} parent=0
    _
  %s6 = ssub.s32 1, %s4
  %s7 = scalar_select 0, %s6, %s4
  %8 = sst [smem:[#allocation2]] %s2
  $region1: #{tpu_custom_call.1} parent=0
    #allocation3 [shape = 'u8[1024]{0}', space=vmem, size = 0x400, scoped, tag = 'output window, operand 0, single buffered']
    #allocation4 [shape = 's32[1]{0}', space=sflag, size = 0x4, scoped, tag = 'scoped memory for tpu_custom_call.1']
    %9 = vsyncpa [#allocation4], 0
    // Predicated region
    $region2: #{tpu_custom_call.1} parent=1 // pred_check
      _
    $region3: #{tpu_custom_call.1} parent=1 // pred_check_branch
      %11 = sbr.rel (0) target = $region5
    $region4: #{tpu_custom_call.1} parent=1 // pred_region
      _
    $region5: #{tpu_custom_call.1} parent=1 // pred_fallthru
      _
    // Predicated region
    $region6: #{tpu_custom_call.1} parent=1 // pred_check
      _
    $region7: #{tpu_custom_call.1} parent=1 // pred_check_branch
      %13 = sbr.rel (0) target = $region9
    $region8: #{tpu_custom_call.1} parent=1 // pred_region
      _
    $region9: #{tpu_custom_call.1} parent=1 // pred_fallthru
      _
    // Predicated region
    $region10: #{tpu_custom_call.1} parent=1 // pred_check
      _
    $region11: #{tpu_custom_call.1} parent=1 // pred_check_branch
      %15 = sbr.rel (0) target = $region13
    $region12: #{tpu_custom_call.1} parent=1 // pred_region
      _
    $region13: #{tpu_custom_call.1} parent=1 // pred_fallthru
      _
    %v16 = vld [vmem:[%s0] sm:$0xff]
    %v17 = vld [vmem:[%s0 + $0x8] sm:$0xff]
    %v18 = vld [vmem:[%s0 + $0x10] sm:$0xff]
    %v19 = vld [vmem:[%s0 + $0x18] sm:$0xff]
    %v20 = vld [vmem:[%s0 + $0x20] sm:$0xff]
    %v21 = vld [vmem:[%s0 + $0x28] sm:$0xff]
    %v22 = vld [vmem:[%s0 + $0x30] sm:$0xff]
    %v23 = vld [vmem:[%s0 + $0x38] sm:$0xff]
    %v24 = vld [vmem:[%s0 + $0x40] sm:$0xff]
    %v25 = vld [vmem:[%s0 + $0x48] sm:$0xff]
    %v26 = vld [vmem:[%s0 + $0x50] sm:$0xff]
    %v27 = vld [vmem:[%s0 + $0x58] sm:$0xff]
    %v28 = vld [vmem:[%s0 + $0x60] sm:$0xff]
    %v29 = vld [vmem:[%s0 + $0x68] sm:$0xff]
    %v30 = vld [vmem:[%s0 + $0x70] sm:$0xff]
    %v31 = vld [vmem:[%s0 + $0x78] sm:$0xff]
    %v32 = vld [vmem:[%s0 + $0x80] sm:$0xff]
    %v33 = vld [vmem:[%s0 + $0x88] sm:$0xff]
    %v34 = vld [vmem:[%s0 + $0x90] sm:$0xff]
    %v35 = vld [vmem:[%s0 + $0x98] sm:$0xff]
    %v36 = vld [vmem:[%s0 + $0xa0] sm:$0xff]
    %v37 = vld [vmem:[%s0 + $0xa8] sm:$0xff]
    %v38 = vld [vmem:[%s0 + $0xb0] sm:$0xff]
    %v39 = vld [vmem:[%s0 + $0xb8] sm:$0xff]
    %v40 = vld [vmem:[%s0 + $0xc0] sm:$0xff]
    %v41 = vld [vmem:[%s0 + $0xc8] sm:$0xff]
    %v42 = vld [vmem:[%s0 + $0xd0] sm:$0xff]
    %v43 = vld [vmem:[%s0 + $0xd8] sm:$0xff]
    %v44 = vld [vmem:[%s0 + $0xe0] sm:$0xff]
    %v45 = vld [vmem:[%s0 + $0xe8] sm:$0xff]
    %v46 = vld [vmem:[%s0 + $0xf0] sm:$0xff]
    %v47 = vld [vmem:[%s0 + $0xf8] sm:$0xff]
    %v48 = vld [vmem:[%s1] sm:$0x1]
    %v50 = vlaneseq
    %v51 = vshrl.u32 %v50, 7
    %v52 = vsub.s32 0, %v51
    %v53 = vrot.slane %v48, %v52
    %v55 = vmul.f32 %v16, %v53
    %v56 = vmul.f32 %v17, %v53
    %v57 = vmul.f32 %v18, %v53
    %v58 = vmul.f32 %v19, %v53
    %v59 = vmul.f32 %v20, %v53
    %v60 = vmul.f32 %v21, %v53
    %v61 = vmul.f32 %v22, %v53
    %v62 = vmul.f32 %v23, %v53
    %v63 = vmul.f32 %v24, %v53
    %v64 = vmul.f32 %v25, %v53
    %v65 = vmul.f32 %v26, %v53
    %v66 = vmul.f32 %v27, %v53
    %v67 = vmul.f32 %v28, %v53
    %v68 = vmul.f32 %v29, %v53
    %v69 = vmul.f32 %v30, %v53
    %v70 = vmul.f32 %v31, %v53
    %v71 = vmul.f32 %v32, %v53
    %v72 = vmul.f32 %v33, %v53
    %v73 = vmul.f32 %v34, %v53
    %v74 = vmul.f32 %v35, %v53
    %v75 = vmul.f32 %v36, %v53
    %v76 = vmul.f32 %v37, %v53
    %v77 = vmul.f32 %v38, %v53
    %v78 = vmul.f32 %v39, %v53
    %v79 = vmul.f32 %v40, %v53
    %v80 = vmul.f32 %v41, %v53
    %v81 = vmul.f32 %v42, %v53
    %v82 = vmul.f32 %v43, %v53
    %v83 = vmul.f32 %v44, %v53
    %v84 = vmul.f32 %v45, %v53
    %v85 = vmul.f32 %v46, %v53
    %v86 = vmul.f32 %v47, %v53
    %vm87 = vcmask 261120
    %v88 = vsel %vm87, %v55, 0.0
    %89 = vadd.xlane.f32.xlu0 %v88
    %v90 = vpop.xlane.xlu0 %89
    %v91 = vsel %vm87, %v56, 0.0
    %92 = vadd.xlane.f32.xlu0 %v91
    %v93 = vpop.xlane.xlu0 %92
    %v94 = vsel %vm87, %v57, 0.0
    %95 = vadd.xlane.f32.xlu0 %v94
    %v96 = vpop.xlane.xlu0 %95
    %v97 = vsel %vm87, %v58, 0.0
    %98 = vadd.xlane.f32.xlu0 %v97
    %v99 = vpop.xlane.xlu0 %98
    %v100 = vsel %vm87, %v59, 0.0
    %101 = vadd.xlane.f32.xlu0 %v100
    %v102 = vpop.xlane.xlu0 %101
    %v103 = vsel %vm87, %v60, 0.0
    %104 = vadd.xlane.f32.xlu0 %v103
    %v105 = vpop.xlane.xlu0 %104
    %v106 = vsel %vm87, %v61, 0.0
    %107 = vadd.xlane.f32.xlu0 %v106
    %v108 = vpop.xlane.xlu0 %107
    %v109 = vsel %vm87, %v62, 0.0
    %110 = vadd.xlane.f32.xlu0 %v109
    %v111 = vpop.xlane.xlu0 %110
    %v112 = vsel %vm87, %v63, 0.0
    %113 = vadd.xlane.f32.xlu0 %v112
    %v114 = vpop.xlane.xlu0 %113
    %v115 = vsel %vm87, %v64, 0.0
    %116 = vadd.xlane.f32.xlu0 %v115
    %v117 = vpop.xlane.xlu0 %116
    %v118 = vsel %vm87, %v65, 0.0
    %119 = vadd.xlane.f32.xlu0 %v118
    %v120 = vpop.xlane.xlu0 %119
    %v121 = vsel %vm87, %v66, 0.0
    %122 = vadd.xlane.f32.xlu0 %v121
    %v123 = vpop.xlane.xlu0 %122
    %v124 = vsel %vm87, %v67, 0.0
    %125 = vadd.xlane.f32.xlu0 %v124
    %v126 = vpop.xlane.xlu0 %125
    %v127 = vsel %vm87, %v68, 0.0
    %128 = vadd.xlane.f32.xlu0 %v127
    %v129 = vpop.xlane.xlu0 %128
    %v130 = vsel %vm87, %v69, 0.0
    %131 = vadd.xlane.f32.xlu0 %v130
    %v132 = vpop.xlane.xlu0 %131
    %v133 = vsel %vm87, %v70, 0.0
    %134 = vadd.xlane.f32.xlu0 %v133
    %v135 = vpop.xlane.xlu0 %134
    %v136 = vsel %vm87, %v71, 0.0
    %137 = vadd.xlane.f32.xlu0 %v136
    %v138 = vpop.xlane.xlu0 %137
    %v139 = vsel %vm87, %v72, 0.0
    %140 = vadd.xlane.f32.xlu0 %v139
    %v141 = vpop.xlane.xlu0 %140
    %v142 = vsel %vm87, %v73, 0.0
    %143 = vadd.xlane.f32.xlu0 %v142
    %v144 = vpop.xlane.xlu0 %143
    %v145 = vsel %vm87, %v74, 0.0
    %146 = vadd.xlane.f32.xlu0 %v145
    %v147 = vpop.xlane.xlu0 %146
    %v148 = vsel %vm87, %v75, 0.0
    %149 = vadd.xlane.f32.xlu0 %v148
    %v150 = vpop.xlane.xlu0 %149
    %v151 = vsel %vm87, %v76, 0.0
    %152 = vadd.xlane.f32.xlu0 %v151
    %v153 = vpop.xlane.xlu0 %152
    %v154 = vsel %vm87, %v77, 0.0
    %155 = vadd.xlane.f32.xlu0 %v154
    %v156 = vpop.xlane.xlu0 %155
    %v157 = vsel %vm87, %v78, 0.0
    %158 = vadd.xlane.f32.xlu0 %v157
    %v159 = vpop.xlane.xlu0 %158
    %v160 = vsel %vm87, %v79, 0.0
    %161 = vadd.xlane.f32.xlu0 %v160
    %v162 = vpop.xlane.xlu0 %161
    %v163 = vsel %vm87, %v80, 0.0
    %164 = vadd.xlane.f32.xlu0 %v163
    %v165 = vpop.xlane.xlu0 %164
    %v166 = vsel %vm87, %v81, 0.0
    %167 = vadd.xlane.f32.xlu0 %v166
    %v168 = vpop.xlane.xlu0 %167
    %v169 = vsel %vm87, %v82, 0.0
    %170 = vadd.xlane.f32.xlu0 %v169
    %v171 = vpop.xlane.xlu0 %170
    %v172 = vsel %vm87, %v83, 0.0
    %173 = vadd.xlane.f32.xlu0 %v172
    %v174 = vpop.xlane.xlu0 %173
    %v175 = vsel %vm87, %v84, 0.0
    %176 = vadd.xlane.f32.xlu0 %v175
    %v177 = vpop.xlane.xlu0 %176
    %v178 = vsel %vm87, %v85, 0.0
    %179 = vadd.xlane.f32.xlu0 %v178
    %v180 = vpop.xlane.xlu0 %179
    %v181 = vsel %vm87, %v86, 0.0
    %182 = vadd.xlane.f32.xlu0 %v181
    %v183 = vpop.xlane.xlu0 %182
    %s184 = sld [smem:[#allocation2]]
    %v185 = vstv %s184
    %v186 = vadd.f32 %v90, %v185
    %v187 = vadd.f32 %v93, %v185
    %v188 = vadd.f32 %v96, %v185
    %v189 = vadd.f32 %v99, %v185
    %v190 = vadd.f32 %v102, %v185
    %v191 = vadd.f32 %v105, %v185
    %v192 = vadd.f32 %v108, %v185
    %v193 = vadd.f32 %v111, %v185
    %v194 = vadd.f32 %v114, %v185
    %v195 = vadd.f32 %v117, %v185
    %v196 = vadd.f32 %v120, %v185
    %v197 = vadd.f32 %v123, %v185
    %v198 = vadd.f32 %v126, %v185
    %v199 = vadd.f32 %v129, %v185
    %v200 = vadd.f32 %v132, %v185
    %v201 = vadd.f32 %v135, %v185
    %v202 = vadd.f32 %v138, %v185
    %v203 = vadd.f32 %v141, %v185
    %v204 = vadd.f32 %v144, %v185
    %v205 = vadd.f32 %v147, %v185
    %v206 = vadd.f32 %v150, %v185
    %v207 = vadd.f32 %v153, %v185
    %v208 = vadd.f32 %v156, %v185
    %v209 = vadd.f32 %v159, %v185
    %v210 = vadd.f32 %v162, %v185
    %v211 = vadd.f32 %v165, %v185
    %v212 = vadd.f32 %v168, %v185
    %v213 = vadd.f32 %v171, %v185
    %v214 = vadd.f32 %v174, %v185
    %v215 = vadd.f32 %v177, %v185
    %v216 = vadd.f32 %v180, %v185
    %v217 = vadd.f32 %v183, %v185
    %v218 = vxor.u32 %v186, 2147483648
    %v219 = vxor.u32 %v187, 2147483648
    %v220 = vxor.u32 %v188, 2147483648
    %v221 = vxor.u32 %v189, 2147483648
    %v222 = vxor.u32 %v190, 2147483648
    %v223 = vxor.u32 %v191, 2147483648
    %v224 = vxor.u32 %v192, 2147483648
    %v225 = vxor.u32 %v193, 2147483648
    %v226 = vxor.u32 %v194, 2147483648
    %v227 = vxor.u32 %v195, 2147483648
    %v228 = vxor.u32 %v196, 2147483648
    %v229 = vxor.u32 %v197, 2147483648
    %v230 = vxor.u32 %v198, 2147483648
    %v231 = vxor.u32 %v199, 2147483648
    %v232 = vxor.u32 %v200, 2147483648
    %v233 = vxor.u32 %v201, 2147483648
    %v234 = vxor.u32 %v202, 2147483648
    %v235 = vxor.u32 %v203, 2147483648
    %v236 = vxor.u32 %v204, 2147483648
    %v237 = vxor.u32 %v205, 2147483648
    %v238 = vxor.u32 %v206, 2147483648
    %v239 = vxor.u32 %v207, 2147483648
    %v240 = vxor.u32 %v208, 2147483648
    %v241 = vxor.u32 %v209, 2147483648
    %v242 = vxor.u32 %v210, 2147483648
    %v243 = vxor.u32 %v211, 2147483648
    %v244 = vxor.u32 %v212, 2147483648
    %v245 = vxor.u32 %v213, 2147483648
    %v246 = vxor.u32 %v214, 2147483648
    %v247 = vxor.u32 %v215, 2147483648
    %v248 = vxor.u32 %v216, 2147483648
    %v249 = vxor.u32 %v217, 2147483648
    %v250 = vmul.f32 %v218, 1.442695
    %v251 = vpow.pop %v250
    %v252 = vmul.f32 %v219, 1.442695
    %v253 = vpow.pop %v252
    %v254 = vmul.f32 %v220, 1.442695
    %v255 = vpow.pop %v254
    %v256 = vmul.f32 %v221, 1.442695
    %v257 = vpow.pop %v256
    %v258 = vmul.f32 %v222, 1.442695
    %v259 = vpow.pop %v258
    %v260 = vmul.f32 %v223, 1.442695
    %v261 = vpow.pop %v260
    %v262 = vmul.f32 %v224, 1.442695
    %v263 = vpow.pop %v262
    %v264 = vmul.f32 %v225, 1.442695
    %v265 = vpow.pop %v264
    %v266 = vmul.f32 %v226, 1.442695
    %v267 = vpow.pop %v266
    %v268 = vmul.f32 %v227, 1.442695
    %v269 = vpow.pop %v268
    %v270 = vmul.f32 %v228, 1.442695
    %v271 = vpow.pop %v270
    %v272 = vmul.f32 %v229, 1.442695
    %v273 = vpow.pop %v272
    %v274 = vmul.f32 %v230, 1.442695
    %v275 = vpow.pop %v274
    %v276 = vmul.f32 %v231, 1.442695
    %v277 = vpow.pop %v276
    %v278 = vmul.f32 %v232, 1.442695
    %v279 = vpow.pop %v278
    %v280 = vmul.f32 %v233, 1.442695
    %v281 = vpow.pop %v280
    %v282 = vmul.f32 %v234, 1.442695
    %v283 = vpow.pop %v282
    %v284 = vmul.f32 %v235, 1.442695
    %v285 = vpow.pop %v284
    %v286 = vmul.f32 %v236, 1.442695
    %v287 = vpow.pop %v286
    %v288 = vmul.f32 %v237, 1.442695
    %v289 = vpow.pop %v288
    %v290 = vmul.f32 %v238, 1.442695
    %v291 = vpow.pop %v290
    %v292 = vmul.f32 %v239, 1.442695
    %v293 = vpow.pop %v292
    %v294 = vmul.f32 %v240, 1.442695
    %v295 = vpow.pop %v294
    %v296 = vmul.f32 %v241, 1.442695
    %v297 = vpow.pop %v296
    %v298 = vmul.f32 %v242, 1.442695
    %v299 = vpow.pop %v298
    %v300 = vmul.f32 %v243, 1.442695
    %v301 = vpow.pop %v300
    %v302 = vmul.f32 %v244, 1.442695
    %v303 = vpow.pop %v302
    %v304 = vmul.f32 %v245, 1.442695
    %v305 = vpow.pop %v304
    %v306 = vmul.f32 %v246, 1.442695
    %v307 = vpow.pop %v306
    %v308 = vmul.f32 %v247, 1.442695
    %v309 = vpow.pop %v308
    %v310 = vmul.f32 %v248, 1.442695
    %v311 = vpow.pop %v310
    %v312 = vmul.f32 %v249, 1.442695
    %v313 = vpow.pop %v312
    %v314 = vadd.f32 %v251, 1.0
    %v315 = vadd.f32 %v253, 1.0
    %v316 = vadd.f32 %v255, 1.0
    %v317 = vadd.f32 %v257, 1.0
    %v318 = vadd.f32 %v259, 1.0
    %v319 = vadd.f32 %v261, 1.0
    %v320 = vadd.f32 %v263, 1.0
    %v321 = vadd.f32 %v265, 1.0
    %v322 = vadd.f32 %v267, 1.0
    %v323 = vadd.f32 %v269, 1.0
    %v324 = vadd.f32 %v271, 1.0
    %v325 = vadd.f32 %v273, 1.0
    %v326 = vadd.f32 %v275, 1.0
    %v327 = vadd.f32 %v277, 1.0
    %v328 = vadd.f32 %v279, 1.0
    %v329 = vadd.f32 %v281, 1.0
    %v330 = vadd.f32 %v283, 1.0
    %v331 = vadd.f32 %v285, 1.0
    %v332 = vadd.f32 %v287, 1.0
    %v333 = vadd.f32 %v289, 1.0
    %v334 = vadd.f32 %v291, 1.0
    %v335 = vadd.f32 %v293, 1.0
    %v336 = vadd.f32 %v295, 1.0
    %v337 = vadd.f32 %v297, 1.0
    %v338 = vadd.f32 %v299, 1.0
    %v339 = vadd.f32 %v301, 1.0
    %v340 = vadd.f32 %v303, 1.0
    %v341 = vadd.f32 %v305, 1.0
    %v342 = vadd.f32 %v307, 1.0
    %v343 = vadd.f32 %v309, 1.0
    %v344 = vadd.f32 %v311, 1.0
    %v345 = vadd.f32 %v313, 1.0
    %v346 = vrcp.pop %v314
    %v347 = vmul.f32 1.0, %v346
    %v348 = vrcp.pop %v315
    %v349 = vmul.f32 1.0, %v348
    %v350 = vrcp.pop %v316
    %v351 = vmul.f32 1.0, %v350
    %v352 = vrcp.pop %v317
    %v353 = vmul.f32 1.0, %v352
    %v354 = vrcp.pop %v318
    %v355 = vmul.f32 1.0, %v354
    %v356 = vrcp.pop %v319
    %v357 = vmul.f32 1.0, %v356
    %v358 = vrcp.pop %v320
    %v359 = vmul.f32 1.0, %v358
    %v360 = vrcp.pop %v321
    %v361 = vmul.f32 1.0, %v360
    %v362 = vrcp.pop %v322
    %v363 = vmul.f32 1.0, %v362
    %v364 = vrcp.pop %v323
    %v365 = vmul.f32 1.0, %v364
    %v366 = vrcp.pop %v324
    %v367 = vmul.f32 1.0, %v366
    %v368 = vrcp.pop %v325
    %v369 = vmul.f32 1.0, %v368
    %v370 = vrcp.pop %v326
    %v371 = vmul.f32 1.0, %v370
    %v372 = vrcp.pop %v327
    %v373 = vmul.f32 1.0, %v372
    %v374 = vrcp.pop %v328
    %v375 = vmul.f32 1.0, %v374
    %v376 = vrcp.pop %v329
    %v377 = vmul.f32 1.0, %v376
    %v378 = vrcp.pop %v330
    %v379 = vmul.f32 1.0, %v378
    %v380 = vrcp.pop %v331
    %v381 = vmul.f32 1.0, %v380
    %v382 = vrcp.pop %v332
    %v383 = vmul.f32 1.0, %v382
    %v384 = vrcp.pop %v333
    %v385 = vmul.f32 1.0, %v384
    %v386 = vrcp.pop %v334
    %v387 = vmul.f32 1.0, %v386
    %v388 = vrcp.pop %v335
    %v389 = vmul.f32 1.0, %v388
    %v390 = vrcp.pop %v336
    %v391 = vmul.f32 1.0, %v390
    %v392 = vrcp.pop %v337
    %v393 = vmul.f32 1.0, %v392
    %v394 = vrcp.pop %v338
    %v395 = vmul.f32 1.0, %v394
    %v396 = vrcp.pop %v339
    %v397 = vmul.f32 1.0, %v396
    %v398 = vrcp.pop %v340
    %v399 = vmul.f32 1.0, %v398
    %v400 = vrcp.pop %v341
    %v401 = vmul.f32 1.0, %v400
    %v402 = vrcp.pop %v342
    %v403 = vmul.f32 1.0, %v402
    %v404 = vrcp.pop %v343
    %v405 = vmul.f32 1.0, %v404
    %v406 = vrcp.pop %v344
    %v407 = vmul.f32 1.0, %v406
    %v408 = vrcp.pop %v345
    %v409 = vmul.f32 1.0, %v408
    %v442 = vlaneseq
    %v443 = vshrl.u32 %v442, 7
    %v444 = vsub.s32 0, %v443
    %v445 = vrot.slane %v347, %v444
    %v446 = vlaneseq
    %v447 = vshrl.u32 %v446, 7
    %v448 = vsub.s32 1, %v447
    %v449 = vrot.slane %v347, %v448
    %v450 = vlaneseq
    %v451 = vshrl.u32 %v450, 7
    %v452 = vsub.s32 2, %v451
    %v453 = vrot.slane %v347, %v452
    %v454 = vlaneseq
    %v455 = vshrl.u32 %v454, 7
    %v456 = vsub.s32 3, %v455
    %v457 = vrot.slane %v347, %v456
    %v458 = vlaneseq
    %v459 = vshrl.u32 %v458, 7
    %v460 = vsub.s32 4, %v459
    %v461 = vrot.slane %v347, %v460
    %v462 = vlaneseq
    %v463 = vshrl.u32 %v462, 7
    %v464 = vsub.s32 5, %v463
    %v465 = vrot.slane %v347, %v464
    %v466 = vlaneseq
    %v467 = vshrl.u32 %v466, 7
    %v468 = vsub.s32 6, %v467
    %v469 = vrot.slane %v347, %v468
    %v470 = vlaneseq
    %v471 = vshrl.u32 %v470, 7
    %v472 = vsub.s32 7, %v471
    %v473 = vrot.slane %v347, %v472
    %v474 = vlaneseq
    %v475 = vshrl.u32 %v474, 7
    %v476 = vsub.s32 0, %v475
    %v477 = vrot.slane %v349, %v476
    %v478 = vlaneseq
    %v479 = vshrl.u32 %v478, 7
    %v480 = vsub.s32 1, %v479
    %v481 = vrot.slane %v349, %v480
    %v482 = vlaneseq
    %v483 = vshrl.u32 %v482, 7
    %v484 = vsub.s32 2, %v483
    %v485 = vrot.slane %v349, %v484
    %v486 = vlaneseq
    %v487 = vshrl.u32 %v486, 7
    %v488 = vsub.s32 3, %v487
    %v489 = vrot.slane %v349, %v488
    %v490 = vlaneseq
    %v491 = vshrl.u32 %v490, 7
    %v492 = vsub.s32 4, %v491
    %v493 = vrot.slane %v349, %v492
    %v494 = vlaneseq
    %v495 = vshrl.u32 %v494, 7
    %v496 = vsub.s32 5, %v495
    %v497 = vrot.slane %v349, %v496
    %v498 = vlaneseq
    %v499 = vshrl.u32 %v498, 7
    %v500 = vsub.s32 6, %v499
    %v501 = vrot.slane %v349, %v500
    %v502 = vlaneseq
    %v503 = vshrl.u32 %v502, 7
    %v504 = vsub.s32 7, %v503
    %v505 = vrot.slane %v349, %v504
    %v506 = vlaneseq
    %v507 = vshrl.u32 %v506, 7
    %v508 = vsub.s32 0, %v507
    %v509 = vrot.slane %v351, %v508
    %v510 = vlaneseq
    %v511 = vshrl.u32 %v510, 7
    %v512 = vsub.s32 1, %v511
    %v513 = vrot.slane %v351, %v512
    %v514 = vlaneseq
    %v515 = vshrl.u32 %v514, 7
    %v516 = vsub.s32 2, %v515
    %v517 = vrot.slane %v351, %v516
    %v518 = vlaneseq
    %v519 = vshrl.u32 %v518, 7
    %v520 = vsub.s32 3, %v519
    %v521 = vrot.slane %v351, %v520
    %v522 = vlaneseq
    %v523 = vshrl.u32 %v522, 7
    %v524 = vsub.s32 4, %v523
    %v525 = vrot.slane %v351, %v524
    %v526 = vlaneseq
    %v527 = vshrl.u32 %v526, 7
    %v528 = vsub.s32 5, %v527
    %v529 = vrot.slane %v351, %v528
    %v530 = vlaneseq
    %v531 = vshrl.u32 %v530, 7
    %v532 = vsub.s32 6, %v531
    %v533 = vrot.slane %v351, %v532
    %v534 = vlaneseq
    %v535 = vshrl.u32 %v534, 7
    %v536 = vsub.s32 7, %v535
    %v537 = vrot.slane %v351, %v536
    %v538 = vlaneseq
    %v539 = vshrl.u32 %v538, 7
    %v540 = vsub.s32 0, %v539
    %v541 = vrot.slane %v353, %v540
    %v542 = vlaneseq
    %v543 = vshrl.u32 %v542, 7
    %v544 = vsub.s32 1, %v543
    %v545 = vrot.slane %v353, %v544
    %v546 = vlaneseq
    %v547 = vshrl.u32 %v546, 7
    %v548 = vsub.s32 2, %v547
    %v549 = vrot.slane %v353, %v548
    %v550 = vlaneseq
    %v551 = vshrl.u32 %v550, 7
    %v552 = vsub.s32 3, %v551
    %v553 = vrot.slane %v353, %v552
    %v554 = vlaneseq
    %v555 = vshrl.u32 %v554, 7
    %v556 = vsub.s32 4, %v555
    %v557 = vrot.slane %v353, %v556
    %v558 = vlaneseq
    %v559 = vshrl.u32 %v558, 7
    %v560 = vsub.s32 5, %v559
    %v561 = vrot.slane %v353, %v560
    %v562 = vlaneseq
    %v563 = vshrl.u32 %v562, 7
    %v564 = vsub.s32 6, %v563
    %v565 = vrot.slane %v353, %v564
    %v566 = vlaneseq
    %v567 = vshrl.u32 %v566, 7
    %v568 = vsub.s32 7, %v567
    %v569 = vrot.slane %v353, %v568
    %v570 = vlaneseq
    %v571 = vshrl.u32 %v570, 7
    %v572 = vsub.s32 0, %v571
    %v573 = vrot.slane %v355, %v572
    %v574 = vlaneseq
    %v575 = vshrl.u32 %v574, 7
    %v576 = vsub.s32 1, %v575
    %v577 = vrot.slane %v355, %v576
    %v578 = vlaneseq
    %v579 = vshrl.u32 %v578, 7
    %v580 = vsub.s32 2, %v579
    %v581 = vrot.slane %v355, %v580
    %v582 = vlaneseq
    %v583 = vshrl.u32 %v582, 7
    %v584 = vsub.s32 3, %v583
    %v585 = vrot.slane %v355, %v584
    %v586 = vlaneseq
    %v587 = vshrl.u32 %v586, 7
    %v588 = vsub.s32 4, %v587
    %v589 = vrot.slane %v355, %v588
    %v590 = vlaneseq
    %v591 = vshrl.u32 %v590, 7
    %v592 = vsub.s32 5, %v591
    %v593 = vrot.slane %v355, %v592
    %v594 = vlaneseq
    %v595 = vshrl.u32 %v594, 7
    %v596 = vsub.s32 6, %v595
    %v597 = vrot.slane %v355, %v596
    %v598 = vlaneseq
    %v599 = vshrl.u32 %v598, 7
    %v600 = vsub.s32 7, %v599
    %v601 = vrot.slane %v355, %v600
    %v602 = vlaneseq
    %v603 = vshrl.u32 %v602, 7
    %v604 = vsub.s32 0, %v603
    %v605 = vrot.slane %v357, %v604
    %v606 = vlaneseq
    %v607 = vshrl.u32 %v606, 7
    %v608 = vsub.s32 1, %v607
    %v609 = vrot.slane %v357, %v608
    %v610 = vlaneseq
    %v611 = vshrl.u32 %v610, 7
    %v612 = vsub.s32 2, %v611
    %v613 = vrot.slane %v357, %v612
    %v614 = vlaneseq
    %v615 = vshrl.u32 %v614, 7
    %v616 = vsub.s32 3, %v615
    %v617 = vrot.slane %v357, %v616
    %v618 = vlaneseq
    %v619 = vshrl.u32 %v618, 7
    %v620 = vsub.s32 4, %v619
    %v621 = vrot.slane %v357, %v620
    %v622 = vlaneseq
    %v623 = vshrl.u32 %v622, 7
    %v624 = vsub.s32 5, %v623
    %v625 = vrot.slane %v357, %v624
    %v626 = vlaneseq
    %v627 = vshrl.u32 %v626, 7
    %v628 = vsub.s32 6, %v627
    %v629 = vrot.slane %v357, %v628
    %v630 = vlaneseq
    %v631 = vshrl.u32 %v630, 7
    %v632 = vsub.s32 7, %v631
    %v633 = vrot.slane %v357, %v632
    %v634 = vlaneseq
    %v635 = vshrl.u32 %v634, 7
    %v636 = vsub.s32 0, %v635
    %v637 = vrot.slane %v359, %v636
    %v638 = vlaneseq
    %v639 = vshrl.u32 %v638, 7
    %v640 = vsub.s32 1, %v639
    %v641 = vrot.slane %v359, %v640
    %v642 = vlaneseq
    %v643 = vshrl.u32 %v642, 7
    %v644 = vsub.s32 2, %v643
    %v645 = vrot.slane %v359, %v644
    %v646 = vlaneseq
    %v647 = vshrl.u32 %v646, 7
    %v648 = vsub.s32 3, %v647
    %v649 = vrot.slane %v359, %v648
    %v650 = vlaneseq
    %v651 = vshrl.u32 %v650, 7
    %v652 = vsub.s32 4, %v651
    %v653 = vrot.slane %v359, %v652
    %v654 = vlaneseq
    %v655 = vshrl.u32 %v654, 7
    %v656 = vsub.s32 5, %v655
    %v657 = vrot.slane %v359, %v656
    %v658 = vlaneseq
    %v659 = vshrl.u32 %v658, 7
    %v660 = vsub.s32 6, %v659
    %v661 = vrot.slane %v359, %v660
    %v662 = vlaneseq
    %v663 = vshrl.u32 %v662, 7
    %v664 = vsub.s32 7, %v663
    %v665 = vrot.slane %v359, %v664
    %v666 = vlaneseq
    %v667 = vshrl.u32 %v666, 7
    %v668 = vsub.s32 0, %v667
    %v669 = vrot.slane %v361, %v668
    %v670 = vlaneseq
    %v671 = vshrl.u32 %v670, 7
    %v672 = vsub.s32 1, %v671
    %v673 = vrot.slane %v361, %v672
    %v674 = vlaneseq
    %v675 = vshrl.u32 %v674, 7
    %v676 = vsub.s32 2, %v675
    %v677 = vrot.slane %v361, %v676
    %v678 = vlaneseq
    %v679 = vshrl.u32 %v678, 7
    %v680 = vsub.s32 3, %v679
    %v681 = vrot.slane %v361, %v680
    %v682 = vlaneseq
    %v683 = vshrl.u32 %v682, 7
    %v684 = vsub.s32 4, %v683
    %v685 = vrot.slane %v361, %v684
    %v686 = vlaneseq
    %v687 = vshrl.u32 %v686, 7
    %v688 = vsub.s32 5, %v687
    %v689 = vrot.slane %v361, %v688
    %v690 = vlaneseq
    %v691 = vshrl.u32 %v690, 7
    %v692 = vsub.s32 6, %v691
    %v693 = vrot.slane %v361, %v692
    %v694 = vlaneseq
    %v695 = vshrl.u32 %v694, 7
    %v696 = vsub.s32 7, %v695
    %v697 = vrot.slane %v361, %v696
    %v698 = vlaneseq
    %v699 = vshrl.u32 %v698, 7
    %v700 = vsub.s32 0, %v699
    %v701 = vrot.slane %v363, %v700
    %v702 = vlaneseq
    %v703 = vshrl.u32 %v702, 7
    %v704 = vsub.s32 1, %v703
    %v705 = vrot.slane %v363, %v704
    %v706 = vlaneseq
    %v707 = vshrl.u32 %v706, 7
    %v708 = vsub.s32 2, %v707
    %v709 = vrot.slane %v363, %v708
    %v710 = vlaneseq
    %v711 = vshrl.u32 %v710, 7
    %v712 = vsub.s32 3, %v711
    %v713 = vrot.slane %v363, %v712
    %v714 = vlaneseq
    %v715 = vshrl.u32 %v714, 7
    %v716 = vsub.s32 4, %v715
    %v717 = vrot.slane %v363, %v716
    %v718 = vlaneseq
    %v719 = vshrl.u32 %v718, 7
    %v720 = vsub.s32 5, %v719
    %v721 = vrot.slane %v363, %v720
    %v722 = vlaneseq
    %v723 = vshrl.u32 %v722, 7
    %v724 = vsub.s32 6, %v723
    %v725 = vrot.slane %v363, %v724
    %v726 = vlaneseq
    %v727 = vshrl.u32 %v726, 7
    %v728 = vsub.s32 7, %v727
    %v729 = vrot.slane %v363, %v728
    %v730 = vlaneseq
    %v731 = vshrl.u32 %v730, 7
    %v732 = vsub.s32 0, %v731
    %v733 = vrot.slane %v365, %v732
    %v734 = vlaneseq
    %v735 = vshrl.u32 %v734, 7
    %v736 = vsub.s32 1, %v735
    %v737 = vrot.slane %v365, %v736
    %v738 = vlaneseq
    %v739 = vshrl.u32 %v738, 7
    %v740 = vsub.s32 2, %v739
    %v741 = vrot.slane %v365, %v740
    %v742 = vlaneseq
    %v743 = vshrl.u32 %v742, 7
    %v744 = vsub.s32 3, %v743
    %v745 = vrot.slane %v365, %v744
    %v746 = vlaneseq
    %v747 = vshrl.u32 %v746, 7
    %v748 = vsub.s32 4, %v747
    %v749 = vrot.slane %v365, %v748
    %v750 = vlaneseq
    %v751 = vshrl.u32 %v750, 7
    %v752 = vsub.s32 5, %v751
    %v753 = vrot.slane %v365, %v752
    %v754 = vlaneseq
    %v755 = vshrl.u32 %v754, 7
    %v756 = vsub.s32 6, %v755
    %v757 = vrot.slane %v365, %v756
    %v758 = vlaneseq
    %v759 = vshrl.u32 %v758, 7
    %v760 = vsub.s32 7, %v759
    %v761 = vrot.slane %v365, %v760
    %v762 = vlaneseq
    %v763 = vshrl.u32 %v762, 7
    %v764 = vsub.s32 0, %v763
    %v765 = vrot.slane %v367, %v764
    %v766 = vlaneseq
    %v767 = vshrl.u32 %v766, 7
    %v768 = vsub.s32 1, %v767
    %v769 = vrot.slane %v367, %v768
    %v770 = vlaneseq
    %v771 = vshrl.u32 %v770, 7
    %v772 = vsub.s32 2, %v771
    %v773 = vrot.slane %v367, %v772
    %v774 = vlaneseq
    %v775 = vshrl.u32 %v774, 7
    %v776 = vsub.s32 3, %v775
    %v777 = vrot.slane %v367, %v776
    %v778 = vlaneseq
    %v779 = vshrl.u32 %v778, 7
    %v780 = vsub.s32 4, %v779
    %v781 = vrot.slane %v367, %v780
    %v782 = vlaneseq
    %v783 = vshrl.u32 %v782, 7
    %v784 = vsub.s32 5, %v783
    %v785 = vrot.slane %v367, %v784
    %v786 = vlaneseq
    %v787 = vshrl.u32 %v786, 7
    %v788 = vsub.s32 6, %v787
    %v789 = vrot.slane %v367, %v788
    %v790 = vlaneseq
    %v791 = vshrl.u32 %v790, 7
    %v792 = vsub.s32 7, %v791
    %v793 = vrot.slane %v367, %v792
    %v794 = vlaneseq
    %v795 = vshrl.u32 %v794, 7
    %v796 = vsub.s32 0, %v795
    %v797 = vrot.slane %v369, %v796
    %v798 = vlaneseq
    %v799 = vshrl.u32 %v798, 7
    %v800 = vsub.s32 1, %v799
    %v801 = vrot.slane %v369, %v800
    %v802 = vlaneseq
    %v803 = vshrl.u32 %v802, 7
    %v804 = vsub.s32 2, %v803
    %v805 = vrot.slane %v369, %v804
    %v806 = vlaneseq
    %v807 = vshrl.u32 %v806, 7
    %v808 = vsub.s32 3, %v807
    %v809 = vrot.slane %v369, %v808
    %v810 = vlaneseq
    %v811 = vshrl.u32 %v810, 7
    %v812 = vsub.s32 4, %v811
    %v813 = vrot.slane %v369, %v812
    %v814 = vlaneseq
    %v815 = vshrl.u32 %v814, 7
    %v816 = vsub.s32 5, %v815
    %v817 = vrot.slane %v369, %v816
    %v818 = vlaneseq
    %v819 = vshrl.u32 %v818, 7
    %v820 = vsub.s32 6, %v819
    %v821 = vrot.slane %v369, %v820
    %v822 = vlaneseq
    %v823 = vshrl.u32 %v822, 7
    %v824 = vsub.s32 7, %v823
    %v825 = vrot.slane %v369, %v824
    %v826 = vlaneseq
    %v827 = vshrl.u32 %v826, 7
    %v828 = vsub.s32 0, %v827
    %v829 = vrot.slane %v371, %v828
    %v830 = vlaneseq
    %v831 = vshrl.u32 %v830, 7
    %v832 = vsub.s32 1, %v831
    %v833 = vrot.slane %v371, %v832
    %v834 = vlaneseq
    %v835 = vshrl.u32 %v834, 7
    %v836 = vsub.s32 2, %v835
    %v837 = vrot.slane %v371, %v836
    %v838 = vlaneseq
    %v839 = vshrl.u32 %v838, 7
    %v840 = vsub.s32 3, %v839
    %v841 = vrot.slane %v371, %v840
    %v842 = vlaneseq
    %v843 = vshrl.u32 %v842, 7
    %v844 = vsub.s32 4, %v843
    %v845 = vrot.slane %v371, %v844
    %v846 = vlaneseq
    %v847 = vshrl.u32 %v846, 7
    %v848 = vsub.s32 5, %v847
    %v849 = vrot.slane %v371, %v848
    %v850 = vlaneseq
    %v851 = vshrl.u32 %v850, 7
    %v852 = vsub.s32 6, %v851
    %v853 = vrot.slane %v371, %v852
    %v854 = vlaneseq
    %v855 = vshrl.u32 %v854, 7
    %v856 = vsub.s32 7, %v855
    %v857 = vrot.slane %v371, %v856
    %v858 = vlaneseq
    %v859 = vshrl.u32 %v858, 7
    %v860 = vsub.s32 0, %v859
    %v861 = vrot.slane %v373, %v860
    %v862 = vlaneseq
    %v863 = vshrl.u32 %v862, 7
    %v864 = vsub.s32 1, %v863
    %v865 = vrot.slane %v373, %v864
    %v866 = vlaneseq
    %v867 = vshrl.u32 %v866, 7
    %v868 = vsub.s32 2, %v867
    %v869 = vrot.slane %v373, %v868
    %v870 = vlaneseq
    %v871 = vshrl.u32 %v870, 7
    %v872 = vsub.s32 3, %v871
    %v873 = vrot.slane %v373, %v872
    %v874 = vlaneseq
    %v875 = vshrl.u32 %v874, 7
    %v876 = vsub.s32 4, %v875
    %v877 = vrot.slane %v373, %v876
    %v878 = vlaneseq
    %v879 = vshrl.u32 %v878, 7
    %v880 = vsub.s32 5, %v879
    %v881 = vrot.slane %v373, %v880
    %v882 = vlaneseq
    %v883 = vshrl.u32 %v882, 7
    %v884 = vsub.s32 6, %v883
    %v885 = vrot.slane %v373, %v884
    %v886 = vlaneseq
    %v887 = vshrl.u32 %v886, 7
    %v888 = vsub.s32 7, %v887
    %v889 = vrot.slane %v373, %v888
    %v890 = vlaneseq
    %v891 = vshrl.u32 %v890, 7
    %v892 = vsub.s32 0, %v891
    %v893 = vrot.slane %v375, %v892
    %v894 = vlaneseq
    %v895 = vshrl.u32 %v894, 7
    %v896 = vsub.s32 1, %v895
    %v897 = vrot.slane %v375, %v896
    %v898 = vlaneseq
    %v899 = vshrl.u32 %v898, 7
    %v900 = vsub.s32 2, %v899
    %v901 = vrot.slane %v375, %v900
    %v902 = vlaneseq
    %v903 = vshrl.u32 %v902, 7
    %v904 = vsub.s32 3, %v903
    %v905 = vrot.slane %v375, %v904
    %v906 = vlaneseq
    %v907 = vshrl.u32 %v906, 7
    %v908 = vsub.s32 4, %v907
    %v909 = vrot.slane %v375, %v908
    %v910 = vlaneseq
    %v911 = vshrl.u32 %v910, 7
    %v912 = vsub.s32 5, %v911
    %v913 = vrot.slane %v375, %v912
    %v914 = vlaneseq
    %v915 = vshrl.u32 %v914, 7
    %v916 = vsub.s32 6, %v915
    %v917 = vrot.slane %v375, %v916
    %v918 = vlaneseq
    %v919 = vshrl.u32 %v918, 7
    %v920 = vsub.s32 7, %v919
    %v921 = vrot.slane %v375, %v920
    %v922 = vlaneseq
    %v923 = vshrl.u32 %v922, 7
    %v924 = vsub.s32 0, %v923
    %v925 = vrot.slane %v377, %v924
    %v926 = vlaneseq
    %v927 = vshrl.u32 %v926, 7
    %v928 = vsub.s32 1, %v927
    %v929 = vrot.slane %v377, %v928
    %v930 = vlaneseq
    %v931 = vshrl.u32 %v930, 7
    %v932 = vsub.s32 2, %v931
    %v933 = vrot.slane %v377, %v932
    %v934 = vlaneseq
    %v935 = vshrl.u32 %v934, 7
    %v936 = vsub.s32 3, %v935
    %v937 = vrot.slane %v377, %v936
    %v938 = vlaneseq
    %v939 = vshrl.u32 %v938, 7
    %v940 = vsub.s32 4, %v939
    %v941 = vrot.slane %v377, %v940
    %v942 = vlaneseq
    %v943 = vshrl.u32 %v942, 7
    %v944 = vsub.s32 5, %v943
    %v945 = vrot.slane %v377, %v944
    %v946 = vlaneseq
    %v947 = vshrl.u32 %v946, 7
    %v948 = vsub.s32 6, %v947
    %v949 = vrot.slane %v377, %v948
    %v950 = vlaneseq
    %v951 = vshrl.u32 %v950, 7
    %v952 = vsub.s32 7, %v951
    %v953 = vrot.slane %v377, %v952
    %v954 = vlaneseq
    %v955 = vshrl.u32 %v954, 7
    %v956 = vsub.s32 0, %v955
    %v957 = vrot.slane %v379, %v956
    %v958 = vlaneseq
    %v959 = vshrl.u32 %v958, 7
    %v960 = vsub.s32 1, %v959
    %v961 = vrot.slane %v379, %v960
    %v962 = vlaneseq
    %v963 = vshrl.u32 %v962, 7
    %v964 = vsub.s32 2, %v963
    %v965 = vrot.slane %v379, %v964
    %v966 = vlaneseq
    %v967 = vshrl.u32 %v966, 7
    %v968 = vsub.s32 3, %v967
    %v969 = vrot.slane %v379, %v968
    %v970 = vlaneseq
    %v971 = vshrl.u32 %v970, 7
    %v972 = vsub.s32 4, %v971
    %v973 = vrot.slane %v379, %v972
    %v974 = vlaneseq
    %v975 = vshrl.u32 %v974, 7
    %v976 = vsub.s32 5, %v975
    %v977 = vrot.slane %v379, %v976
    %v978 = vlaneseq
    %v979 = vshrl.u32 %v978, 7
    %v980 = vsub.s32 6, %v979
    %v981 = vrot.slane %v379, %v980
    %v982 = vlaneseq
    %v983 = vshrl.u32 %v982, 7
    %v984 = vsub.s32 7, %v983
    %v985 = vrot.slane %v379, %v984
    %v986 = vlaneseq
    %v987 = vshrl.u32 %v986, 7
    %v988 = vsub.s32 0, %v987
    %v989 = vrot.slane %v381, %v988
    %v990 = vlaneseq
    %v991 = vshrl.u32 %v990, 7
    %v992 = vsub.s32 1, %v991
    %v993 = vrot.slane %v381, %v992
    %v994 = vlaneseq
    %v995 = vshrl.u32 %v994, 7
    %v996 = vsub.s32 2, %v995
    %v997 = vrot.slane %v381, %v996
    %v998 = vlaneseq
    %v999 = vshrl.u32 %v998, 7
    %v1000 = vsub.s32 3, %v999
    %v1001 = vrot.slane %v381, %v1000
    %v1002 = vlaneseq
    %v1003 = vshrl.u32 %v1002, 7
    %v1004 = vsub.s32 4, %v1003
    %v1005 = vrot.slane %v381, %v1004
    %v1006 = vlaneseq
    %v1007 = vshrl.u32 %v1006, 7
    %v1008 = vsub.s32 5, %v1007
    %v1009 = vrot.slane %v381, %v1008
    %v1010 = vlaneseq
    %v1011 = vshrl.u32 %v1010, 7
    %v1012 = vsub.s32 6, %v1011
    %v1013 = vrot.slane %v381, %v1012
    %v1014 = vlaneseq
    %v1015 = vshrl.u32 %v1014, 7
    %v1016 = vsub.s32 7, %v1015
    %v1017 = vrot.slane %v381, %v1016
    %v1018 = vlaneseq
    %v1019 = vshrl.u32 %v1018, 7
    %v1020 = vsub.s32 0, %v1019
    %v1021 = vrot.slane %v383, %v1020
    %v1022 = vlaneseq
    %v1023 = vshrl.u32 %v1022, 7
    %v1024 = vsub.s32 1, %v1023
    %v1025 = vrot.slane %v383, %v1024
    %v1026 = vlaneseq
    %v1027 = vshrl.u32 %v1026, 7
    %v1028 = vsub.s32 2, %v1027
    %v1029 = vrot.slane %v383, %v1028
    %v1030 = vlaneseq
    %v1031 = vshrl.u32 %v1030, 7
    %v1032 = vsub.s32 3, %v1031
    %v1033 = vrot.slane %v383, %v1032
    %v1034 = vlaneseq
    %v1035 = vshrl.u32 %v1034, 7
    %v1036 = vsub.s32 4, %v1035
    %v1037 = vrot.slane %v383, %v1036
    %v1038 = vlaneseq
    %v1039 = vshrl.u32 %v1038, 7
    %v1040 = vsub.s32 5, %v1039
    %v1041 = vrot.slane %v383, %v1040
    %v1042 = vlaneseq
    %v1043 = vshrl.u32 %v1042, 7
    %v1044 = vsub.s32 6, %v1043
    %v1045 = vrot.slane %v383, %v1044
    %v1046 = vlaneseq
    %v1047 = vshrl.u32 %v1046, 7
    %v1048 = vsub.s32 7, %v1047
    %v1049 = vrot.slane %v383, %v1048
    %v1050 = vlaneseq
    %v1051 = vshrl.u32 %v1050, 7
    %v1052 = vsub.s32 0, %v1051
    %v1053 = vrot.slane %v385, %v1052
    %v1054 = vlaneseq
    %v1055 = vshrl.u32 %v1054, 7
    %v1056 = vsub.s32 1, %v1055
    %v1057 = vrot.slane %v385, %v1056
    %v1058 = vlaneseq
    %v1059 = vshrl.u32 %v1058, 7
    %v1060 = vsub.s32 2, %v1059
    %v1061 = vrot.slane %v385, %v1060
    %v1062 = vlaneseq
    %v1063 = vshrl.u32 %v1062, 7
    %v1064 = vsub.s32 3, %v1063
    %v1065 = vrot.slane %v385, %v1064
    %v1066 = vlaneseq
    %v1067 = vshrl.u32 %v1066, 7
    %v1068 = vsub.s32 4, %v1067
    %v1069 = vrot.slane %v385, %v1068
    %v1070 = vlaneseq
    %v1071 = vshrl.u32 %v1070, 7
    %v1072 = vsub.s32 5, %v1071
    %v1073 = vrot.slane %v385, %v1072
    %v1074 = vlaneseq
    %v1075 = vshrl.u32 %v1074, 7
    %v1076 = vsub.s32 6, %v1075
    %v1077 = vrot.slane %v385, %v1076
    %v1078 = vlaneseq
    %v1079 = vshrl.u32 %v1078, 7
    %v1080 = vsub.s32 7, %v1079
    %v1081 = vrot.slane %v385, %v1080
    %v1082 = vlaneseq
    %v1083 = vshrl.u32 %v1082, 7
    %v1084 = vsub.s32 0, %v1083
    %v1085 = vrot.slane %v387, %v1084
    %v1086 = vlaneseq
    %v1087 = vshrl.u32 %v1086, 7
    %v1088 = vsub.s32 1, %v1087
    %v1089 = vrot.slane %v387, %v1088
    %v1090 = vlaneseq
    %v1091 = vshrl.u32 %v1090, 7
    %v1092 = vsub.s32 2, %v1091
    %v1093 = vrot.slane %v387, %v1092
    %v1094 = vlaneseq
    %v1095 = vshrl.u32 %v1094, 7
    %v1096 = vsub.s32 3, %v1095
    %v1097 = vrot.slane %v387, %v1096
    %v1098 = vlaneseq
    %v1099 = vshrl.u32 %v1098, 7
    %v1100 = vsub.s32 4, %v1099
    %v1101 = vrot.slane %v387, %v1100
    %v1102 = vlaneseq
    %v1103 = vshrl.u32 %v1102, 7
    %v1104 = vsub.s32 5, %v1103
    %v1105 = vrot.slane %v387, %v1104
    %v1106 = vlaneseq
    %v1107 = vshrl.u32 %v1106, 7
    %v1108 = vsub.s32 6, %v1107
    %v1109 = vrot.slane %v387, %v1108
    %v1110 = vlaneseq
    %v1111 = vshrl.u32 %v1110, 7
    %v1112 = vsub.s32 7, %v1111
    %v1113 = vrot.slane %v387, %v1112
    %v1114 = vlaneseq
    %v1115 = vshrl.u32 %v1114, 7
    %v1116 = vsub.s32 0, %v1115
    %v1117 = vrot.slane %v389, %v1116
    %v1118 = vlaneseq
    %v1119 = vshrl.u32 %v1118, 7
    %v1120 = vsub.s32 1, %v1119
    %v1121 = vrot.slane %v389, %v1120
    %v1122 = vlaneseq
    %v1123 = vshrl.u32 %v1122, 7
    %v1124 = vsub.s32 2, %v1123
    %v1125 = vrot.slane %v389, %v1124
    %v1126 = vlaneseq
    %v1127 = vshrl.u32 %v1126, 7
    %v1128 = vsub.s32 3, %v1127
    %v1129 = vrot.slane %v389, %v1128
    %v1130 = vlaneseq
    %v1131 = vshrl.u32 %v1130, 7
    %v1132 = vsub.s32 4, %v1131
    %v1133 = vrot.slane %v389, %v1132
    %v1134 = vlaneseq
    %v1135 = vshrl.u32 %v1134, 7
    %v1136 = vsub.s32 5, %v1135
    %v1137 = vrot.slane %v389, %v1136
    %v1138 = vlaneseq
    %v1139 = vshrl.u32 %v1138, 7
    %v1140 = vsub.s32 6, %v1139
    %v1141 = vrot.slane %v389, %v1140
    %v1142 = vlaneseq
    %v1143 = vshrl.u32 %v1142, 7
    %v1144 = vsub.s32 7, %v1143
    %v1145 = vrot.slane %v389, %v1144
    %v1146 = vlaneseq
    %v1147 = vshrl.u32 %v1146, 7
    %v1148 = vsub.s32 0, %v1147
    %v1149 = vrot.slane %v391, %v1148
    %v1150 = vlaneseq
    %v1151 = vshrl.u32 %v1150, 7
    %v1152 = vsub.s32 1, %v1151
    %v1153 = vrot.slane %v391, %v1152
    %v1154 = vlaneseq
    %v1155 = vshrl.u32 %v1154, 7
    %v1156 = vsub.s32 2, %v1155
    %v1157 = vrot.slane %v391, %v1156
    %v1158 = vlaneseq
    %v1159 = vshrl.u32 %v1158, 7
    %v1160 = vsub.s32 3, %v1159
    %v1161 = vrot.slane %v391, %v1160
    %v1162 = vlaneseq
    %v1163 = vshrl.u32 %v1162, 7
    %v1164 = vsub.s32 4, %v1163
    %v1165 = vrot.slane %v391, %v1164
    %v1166 = vlaneseq
    %v1167 = vshrl.u32 %v1166, 7
    %v1168 = vsub.s32 5, %v1167
    %v1169 = vrot.slane %v391, %v1168
    %v1170 = vlaneseq
    %v1171 = vshrl.u32 %v1170, 7
    %v1172 = vsub.s32 6, %v1171
    %v1173 = vrot.slane %v391, %v1172
    %v1174 = vlaneseq
    %v1175 = vshrl.u32 %v1174, 7
    %v1176 = vsub.s32 7, %v1175
    %v1177 = vrot.slane %v391, %v1176
    %v1178 = vlaneseq
    %v1179 = vshrl.u32 %v1178, 7
    %v1180 = vsub.s32 0, %v1179
    %v1181 = vrot.slane %v393, %v1180
    %v1182 = vlaneseq
    %v1183 = vshrl.u32 %v1182, 7
    %v1184 = vsub.s32 1, %v1183
    %v1185 = vrot.slane %v393, %v1184
    %v1186 = vlaneseq
    %v1187 = vshrl.u32 %v1186, 7
    %v1188 = vsub.s32 2, %v1187
    %v1189 = vrot.slane %v393, %v1188
    %v1190 = vlaneseq
    %v1191 = vshrl.u32 %v1190, 7
    %v1192 = vsub.s32 3, %v1191
    %v1193 = vrot.slane %v393, %v1192
    %v1194 = vlaneseq
    %v1195 = vshrl.u32 %v1194, 7
    %v1196 = vsub.s32 4, %v1195
    %v1197 = vrot.slane %v393, %v1196
    %v1198 = vlaneseq
    %v1199 = vshrl.u32 %v1198, 7
    %v1200 = vsub.s32 5, %v1199
    %v1201 = vrot.slane %v393, %v1200
    %v1202 = vlaneseq
    %v1203 = vshrl.u32 %v1202, 7
    %v1204 = vsub.s32 6, %v1203
    %v1205 = vrot.slane %v393, %v1204
    %v1206 = vlaneseq
    %v1207 = vshrl.u32 %v1206, 7
    %v1208 = vsub.s32 7, %v1207
    %v1209 = vrot.slane %v393, %v1208
    %v1210 = vlaneseq
    %v1211 = vshrl.u32 %v1210, 7
    %v1212 = vsub.s32 0, %v1211
    %v1213 = vrot.slane %v395, %v1212
    %v1214 = vlaneseq
    %v1215 = vshrl.u32 %v1214, 7
    %v1216 = vsub.s32 1, %v1215
    %v1217 = vrot.slane %v395, %v1216
    %v1218 = vlaneseq
    %v1219 = vshrl.u32 %v1218, 7
    %v1220 = vsub.s32 2, %v1219
    %v1221 = vrot.slane %v395, %v1220
    %v1222 = vlaneseq
    %v1223 = vshrl.u32 %v1222, 7
    %v1224 = vsub.s32 3, %v1223
    %v1225 = vrot.slane %v395, %v1224
    %v1226 = vlaneseq
    %v1227 = vshrl.u32 %v1226, 7
    %v1228 = vsub.s32 4, %v1227
    %v1229 = vrot.slane %v395, %v1228
    %v1230 = vlaneseq
    %v1231 = vshrl.u32 %v1230, 7
    %v1232 = vsub.s32 5, %v1231
    %v1233 = vrot.slane %v395, %v1232
    %v1234 = vlaneseq
    %v1235 = vshrl.u32 %v1234, 7
    %v1236 = vsub.s32 6, %v1235
    %v1237 = vrot.slane %v395, %v1236
    %v1238 = vlaneseq
    %v1239 = vshrl.u32 %v1238, 7
    %v1240 = vsub.s32 7, %v1239
    %v1241 = vrot.slane %v395, %v1240
    %v1242 = vlaneseq
    %v1243 = vshrl.u32 %v1242, 7
    %v1244 = vsub.s32 0, %v1243
    %v1245 = vrot.slane %v397, %v1244
    %v1246 = vlaneseq
    %v1247 = vshrl.u32 %v1246, 7
    %v1248 = vsub.s32 1, %v1247
    %v1249 = vrot.slane %v397, %v1248
    %v1250 = vlaneseq
    %v1251 = vshrl.u32 %v1250, 7
    %v1252 = vsub.s32 2, %v1251
    %v1253 = vrot.slane %v397, %v1252
    %v1254 = vlaneseq
    %v1255 = vshrl.u32 %v1254, 7
    %v1256 = vsub.s32 3, %v1255
    %v1257 = vrot.slane %v397, %v1256
    %v1258 = vlaneseq
    %v1259 = vshrl.u32 %v1258, 7
    %v1260 = vsub.s32 4, %v1259
    %v1261 = vrot.slane %v397, %v1260
    %v1262 = vlaneseq
    %v1263 = vshrl.u32 %v1262, 7
    %v1264 = vsub.s32 5, %v1263
    %v1265 = vrot.slane %v397, %v1264
    %v1266 = vlaneseq
    %v1267 = vshrl.u32 %v1266, 7
    %v1268 = vsub.s32 6, %v1267
    %v1269 = vrot.slane %v397, %v1268
    %v1270 = vlaneseq
    %v1271 = vshrl.u32 %v1270, 7
    %v1272 = vsub.s32 7, %v1271
    %v1273 = vrot.slane %v397, %v1272
    %v1274 = vlaneseq
    %v1275 = vshrl.u32 %v1274, 7
    %v1276 = vsub.s32 0, %v1275
    %v1277 = vrot.slane %v399, %v1276
    %v1278 = vlaneseq
    %v1279 = vshrl.u32 %v1278, 7
    %v1280 = vsub.s32 1, %v1279
    %v1281 = vrot.slane %v399, %v1280
    %v1282 = vlaneseq
    %v1283 = vshrl.u32 %v1282, 7
    %v1284 = vsub.s32 2, %v1283
    %v1285 = vrot.slane %v399, %v1284
    %v1286 = vlaneseq
    %v1287 = vshrl.u32 %v1286, 7
    %v1288 = vsub.s32 3, %v1287
    %v1289 = vrot.slane %v399, %v1288
    %v1290 = vlaneseq
    %v1291 = vshrl.u32 %v1290, 7
    %v1292 = vsub.s32 4, %v1291
    %v1293 = vrot.slane %v399, %v1292
    %v1294 = vlaneseq
    %v1295 = vshrl.u32 %v1294, 7
    %v1296 = vsub.s32 5, %v1295
    %v1297 = vrot.slane %v399, %v1296
    %v1298 = vlaneseq
    %v1299 = vshrl.u32 %v1298, 7
    %v1300 = vsub.s32 6, %v1299
    %v1301 = vrot.slane %v399, %v1300
    %v1302 = vlaneseq
    %v1303 = vshrl.u32 %v1302, 7
    %v1304 = vsub.s32 7, %v1303
    %v1305 = vrot.slane %v399, %v1304
    %v1306 = vlaneseq
    %v1307 = vshrl.u32 %v1306, 7
    %v1308 = vsub.s32 0, %v1307
    %v1309 = vrot.slane %v401, %v1308
    %v1310 = vlaneseq
    %v1311 = vshrl.u32 %v1310, 7
    %v1312 = vsub.s32 1, %v1311
    %v1313 = vrot.slane %v401, %v1312
    %v1314 = vlaneseq
    %v1315 = vshrl.u32 %v1314, 7
    %v1316 = vsub.s32 2, %v1315
    %v1317 = vrot.slane %v401, %v1316
    %v1318 = vlaneseq
    %v1319 = vshrl.u32 %v1318, 7
    %v1320 = vsub.s32 3, %v1319
    %v1321 = vrot.slane %v401, %v1320
    %v1322 = vlaneseq
    %v1323 = vshrl.u32 %v1322, 7
    %v1324 = vsub.s32 4, %v1323
    %v1325 = vrot.slane %v401, %v1324
    %v1326 = vlaneseq
    %v1327 = vshrl.u32 %v1326, 7
    %v1328 = vsub.s32 5, %v1327
    %v1329 = vrot.slane %v401, %v1328
    %v1330 = vlaneseq
    %v1331 = vshrl.u32 %v1330, 7
    %v1332 = vsub.s32 6, %v1331
    %v1333 = vrot.slane %v401, %v1332
    %v1334 = vlaneseq
    %v1335 = vshrl.u32 %v1334, 7
    %v1336 = vsub.s32 7, %v1335
    %v1337 = vrot.slane %v401, %v1336
    %v1338 = vlaneseq
    %v1339 = vshrl.u32 %v1338, 7
    %v1340 = vsub.s32 0, %v1339
    %v1341 = vrot.slane %v403, %v1340
    %v1342 = vlaneseq
    %v1343 = vshrl.u32 %v1342, 7
    %v1344 = vsub.s32 1, %v1343
    %v1345 = vrot.slane %v403, %v1344
    %v1346 = vlaneseq
    %v1347 = vshrl.u32 %v1346, 7
    %v1348 = vsub.s32 2, %v1347
    %v1349 = vrot.slane %v403, %v1348
    %v1350 = vlaneseq
    %v1351 = vshrl.u32 %v1350, 7
    %v1352 = vsub.s32 3, %v1351
    %v1353 = vrot.slane %v403, %v1352
    %v1354 = vlaneseq
    %v1355 = vshrl.u32 %v1354, 7
    %v1356 = vsub.s32 4, %v1355
    %v1357 = vrot.slane %v403, %v1356
    %v1358 = vlaneseq
    %v1359 = vshrl.u32 %v1358, 7
    %v1360 = vsub.s32 5, %v1359
    %v1361 = vrot.slane %v403, %v1360
    %v1362 = vlaneseq
    %v1363 = vshrl.u32 %v1362, 7
    %v1364 = vsub.s32 6, %v1363
    %v1365 = vrot.slane %v403, %v1364
    %v1366 = vlaneseq
    %v1367 = vshrl.u32 %v1366, 7
    %v1368 = vsub.s32 7, %v1367
    %v1369 = vrot.slane %v403, %v1368
    %v1370 = vlaneseq
    %v1371 = vshrl.u32 %v1370, 7
    %v1372 = vsub.s32 0, %v1371
    %v1373 = vrot.slane %v405, %v1372
    %v1374 = vlaneseq
    %v1375 = vshrl.u32 %v1374, 7
    %v1376 = vsub.s32 1, %v1375
    %v1377 = vrot.slane %v405, %v1376
    %v1378 = vlaneseq
    %v1379 = vshrl.u32 %v1378, 7
    %v1380 = vsub.s32 2, %v1379
    %v1381 = vrot.slane %v405, %v1380
    %v1382 = vlaneseq
    %v1383 = vshrl.u32 %v1382, 7
    %v1384 = vsub.s32 3, %v1383
    %v1385 = vrot.slane %v405, %v1384
    %v1386 = vlaneseq
    %v1387 = vshrl.u32 %v1386, 7
    %v1388 = vsub.s32 4, %v1387
    %v1389 = vrot.slane %v405, %v1388
    %v1390 = vlaneseq
    %v1391 = vshrl.u32 %v1390, 7
    %v1392 = vsub.s32 5, %v1391
    %v1393 = vrot.slane %v405, %v1392
    %v1394 = vlaneseq
    %v1395 = vshrl.u32 %v1394, 7
    %v1396 = vsub.s32 6, %v1395
    %v1397 = vrot.slane %v405, %v1396
    %v1398 = vlaneseq
    %v1399 = vshrl.u32 %v1398, 7
    %v1400 = vsub.s32 7, %v1399
    %v1401 = vrot.slane %v405, %v1400
    %v1402 = vlaneseq
    %v1403 = vshrl.u32 %v1402, 7
    %v1404 = vsub.s32 0, %v1403
    %v1405 = vrot.slane %v407, %v1404
    %v1406 = vlaneseq
    %v1407 = vshrl.u32 %v1406, 7
    %v1408 = vsub.s32 1, %v1407
    %v1409 = vrot.slane %v407, %v1408
    %v1410 = vlaneseq
    %v1411 = vshrl.u32 %v1410, 7
    %v1412 = vsub.s32 2, %v1411
    %v1413 = vrot.slane %v407, %v1412
    %v1414 = vlaneseq
    %v1415 = vshrl.u32 %v1414, 7
    %v1416 = vsub.s32 3, %v1415
    %v1417 = vrot.slane %v407, %v1416
    %v1418 = vlaneseq
    %v1419 = vshrl.u32 %v1418, 7
    %v1420 = vsub.s32 4, %v1419
    %v1421 = vrot.slane %v407, %v1420
    %v1422 = vlaneseq
    %v1423 = vshrl.u32 %v1422, 7
    %v1424 = vsub.s32 5, %v1423
    %v1425 = vrot.slane %v407, %v1424
    %v1426 = vlaneseq
    %v1427 = vshrl.u32 %v1426, 7
    %v1428 = vsub.s32 6, %v1427
    %v1429 = vrot.slane %v407, %v1428
    %v1430 = vlaneseq
    %v1431 = vshrl.u32 %v1430, 7
    %v1432 = vsub.s32 7, %v1431
    %v1433 = vrot.slane %v407, %v1432
    %v1434 = vlaneseq
    %v1435 = vshrl.u32 %v1434, 7
    %v1436 = vsub.s32 0, %v1435
    %v1437 = vrot.slane %v409, %v1436
    %v1438 = vlaneseq
    %v1439 = vshrl.u32 %v1438, 7
    %v1440 = vsub.s32 1, %v1439
    %v1441 = vrot.slane %v409, %v1440
    %v1442 = vlaneseq
    %v1443 = vshrl.u32 %v1442, 7
    %v1444 = vsub.s32 2, %v1443
    %v1445 = vrot.slane %v409, %v1444
    %v1446 = vlaneseq
    %v1447 = vshrl.u32 %v1446, 7
    %v1448 = vsub.s32 3, %v1447
    %v1449 = vrot.slane %v409, %v1448
    %v1450 = vlaneseq
    %v1451 = vshrl.u32 %v1450, 7
    %v1452 = vsub.s32 4, %v1451
    %v1453 = vrot.slane %v409, %v1452
    %v1454 = vlaneseq
    %v1455 = vshrl.u32 %v1454, 7
    %v1456 = vsub.s32 5, %v1455
    %v1457 = vrot.slane %v409, %v1456
    %v1458 = vlaneseq
    %v1459 = vshrl.u32 %v1458, 7
    %v1460 = vsub.s32 6, %v1459
    %v1461 = vrot.slane %v409, %v1460
    %v1462 = vlaneseq
    %v1463 = vshrl.u32 %v1462, 7
    %v1464 = vsub.s32 7, %v1463
    %v1465 = vrot.slane %v409, %v1464
    %v1466 = vcombine.low %v445, %v449
    %v1467 = vcombine.low %v453, %v457
    %v1468 = vcombine.low %v461, %v465
    %v1469 = vcombine.low %v469, %v473
    %v1471 = vunpack.c.l.s4 1966171168
    %v1472 = vunpack.c.0.s8 %v1471
    %v1473 = vlaneseq
    %v1474 = vshrl.u32 %v1473, 7
    %v1475 = vsub.s32 %v1472, %v1474
    %v1476 = vrot.slane %v1466, %v1475
    %v1478 = vunpack.c.l.s4 1966171168
    %v1479 = vunpack.c.0.s8 %v1478
    %v1480 = vlaneseq
    %v1481 = vshrl.u32 %v1480, 7
    %v1482 = vsub.s32 %v1479, %v1481
    %v1483 = vrot.slane %v1467, %v1482
    %v1485 = vunpack.c.l.s4 1966171168
    %v1486 = vunpack.c.0.s8 %v1485
    %v1487 = vlaneseq
    %v1488 = vshrl.u32 %v1487, 7
    %v1489 = vsub.s32 %v1486, %v1488
    %v1490 = vrot.slane %v1468, %v1489
    %v1492 = vunpack.c.l.s4 1966171168
    %v1493 = vunpack.c.0.s8 %v1492
    %v1494 = vlaneseq
    %v1495 = vshrl.u32 %v1494, 7
    %v1496 = vsub.s32 %v1493, %v1495
    %v1497 = vrot.slane %v1469, %v1496
    %v1498 = vcombine.low %v1476, %v1483
    %v1499 = vcombine.low %v1490, %v1497
    %v1501 = vunpack.c.l.s4 1966171168
    %v1502 = vunpack.c.0.s8 %v1501
    %v1503 = vlaneseq
    %v1504 = vshrl.u32 %v1503, 7
    %v1505 = vsub.s32 %v1502, %v1504
    %v1506 = vrot.slane %v1498, %v1505
    %v1508 = vunpack.c.l.s4 1966171168
    %v1509 = vunpack.c.0.s8 %v1508
    %v1510 = vlaneseq
    %v1511 = vshrl.u32 %v1510, 7
    %v1512 = vsub.s32 %v1509, %v1511
    %v1513 = vrot.slane %v1499, %v1512
    %v1514 = vcombine.low %v1506, %v1513
    %v1515 = vcombine.low %v477, %v481
    %v1516 = vcombine.low %v485, %v489
    %v1517 = vcombine.low %v493, %v497
    %v1518 = vcombine.low %v501, %v505
    %v1520 = vunpack.c.l.s4 1966171168
    %v1521 = vunpack.c.0.s8 %v1520
    %v1522 = vlaneseq
    %v1523 = vshrl.u32 %v1522, 7
    %v1524 = vsub.s32 %v1521, %v1523
    %v1525 = vrot.slane %v1515, %v1524
    %v1527 = vunpack.c.l.s4 1966171168
    %v1528 = vunpack.c.0.s8 %v1527
    %v1529 = vlaneseq
    %v1530 = vshrl.u32 %v1529, 7
    %v1531 = vsub.s32 %v1528, %v1530
    %v1532 = vrot.slane %v1516, %v1531
    %v1534 = vunpack.c.l.s4 1966171168
    %v1535 = vunpack.c.0.s8 %v1534
    %v1536 = vlaneseq
    %v1537 = vshrl.u32 %v1536, 7
    %v1538 = vsub.s32 %v1535, %v1537
    %v1539 = vrot.slane %v1517, %v1538
    %v1541 = vunpack.c.l.s4 1966171168
    %v1542 = vunpack.c.0.s8 %v1541
    %v1543 = vlaneseq
    %v1544 = vshrl.u32 %v1543, 7
    %v1545 = vsub.s32 %v1542, %v1544
    %v1546 = vrot.slane %v1518, %v1545
    %v1547 = vcombine.low %v1525, %v1532
    %v1548 = vcombine.low %v1539, %v1546
    %v1550 = vunpack.c.l.s4 1966171168
    %v1551 = vunpack.c.0.s8 %v1550
    %v1552 = vlaneseq
    %v1553 = vshrl.u32 %v1552, 7
    %v1554 = vsub.s32 %v1551, %v1553
    %v1555 = vrot.slane %v1547, %v1554
    %v1557 = vunpack.c.l.s4 1966171168
    %v1558 = vunpack.c.0.s8 %v1557
    %v1559 = vlaneseq
    %v1560 = vshrl.u32 %v1559, 7
    %v1561 = vsub.s32 %v1558, %v1560
    %v1562 = vrot.slane %v1548, %v1561
    %v1563 = vcombine.low %v1555, %v1562
    %v1564 = vcombine.low %v509, %v513
    %v1565 = vcombine.low %v517, %v521
    %v1566 = vcombine.low %v525, %v529
    %v1567 = vcombine.low %v533, %v537
    %v1569 = vunpack.c.l.s4 1966171168
    %v1570 = vunpack.c.0.s8 %v1569
    %v1571 = vlaneseq
    %v1572 = vshrl.u32 %v1571, 7
    %v1573 = vsub.s32 %v1570, %v1572
    %v1574 = vrot.slane %v1564, %v1573
    %v1576 = vunpack.c.l.s4 1966171168
    %v1577 = vunpack.c.0.s8 %v1576
    %v1578 = vlaneseq
    %v1579 = vshrl.u32 %v1578, 7
    %v1580 = vsub.s32 %v1577, %v1579
    %v1581 = vrot.slane %v1565, %v1580
    %v1583 = vunpack.c.l.s4 1966171168
    %v1584 = vunpack.c.0.s8 %v1583
    %v1585 = vlaneseq
    %v1586 = vshrl.u32 %v1585, 7
    %v1587 = vsub.s32 %v1584, %v1586
    %v1588 = vrot.slane %v1566, %v1587
    %v1590 = vunpack.c.l.s4 1966171168
    %v1591 = vunpack.c.0.s8 %v1590
    %v1592 = vlaneseq
    %v1593 = vshrl.u32 %v1592, 7
    %v1594 = vsub.s32 %v1591, %v1593
    %v1595 = vrot.slane %v1567, %v1594
    %v1596 = vcombine.low %v1574, %v1581
    %v1597 = vcombine.low %v1588, %v1595
    %v1599 = vunpack.c.l.s4 1966171168
    %v1600 = vunpack.c.0.s8 %v1599
    %v1601 = vlaneseq
    %v1602 = vshrl.u32 %v1601, 7
    %v1603 = vsub.s32 %v1600, %v1602
    %v1604 = vrot.slane %v1596, %v1603
    %v1606 = vunpack.c.l.s4 1966171168
    %v1607 = vunpack.c.0.s8 %v1606
    %v1608 = vlaneseq
    %v1609 = vshrl.u32 %v1608, 7
    %v1610 = vsub.s32 %v1607, %v1609
    %v1611 = vrot.slane %v1597, %v1610
    %v1612 = vcombine.low %v1604, %v1611
    %v1613 = vcombine.low %v541, %v545
    %v1614 = vcombine.low %v549, %v553
    %v1615 = vcombine.low %v557, %v561
    %v1616 = vcombine.low %v565, %v569
    %v1618 = vunpack.c.l.s4 1966171168
    %v1619 = vunpack.c.0.s8 %v1618
    %v1620 = vlaneseq
    %v1621 = vshrl.u32 %v1620, 7
    %v1622 = vsub.s32 %v1619, %v1621
    %v1623 = vrot.slane %v1613, %v1622
    %v1625 = vunpack.c.l.s4 1966171168
    %v1626 = vunpack.c.0.s8 %v1625
    %v1627 = vlaneseq
    %v1628 = vshrl.u32 %v1627, 7
    %v1629 = vsub.s32 %v1626, %v1628
    %v1630 = vrot.slane %v1614, %v1629
    %v1632 = vunpack.c.l.s4 1966171168
    %v1633 = vunpack.c.0.s8 %v1632
    %v1634 = vlaneseq
    %v1635 = vshrl.u32 %v1634, 7
    %v1636 = vsub.s32 %v1633, %v1635
    %v1637 = vrot.slane %v1615, %v1636
    %v1639 = vunpack.c.l.s4 1966171168
    %v1640 = vunpack.c.0.s8 %v1639
    %v1641 = vlaneseq
    %v1642 = vshrl.u32 %v1641, 7
    %v1643 = vsub.s32 %v1640, %v1642
    %v1644 = vrot.slane %v1616, %v1643
    %v1645 = vcombine.low %v1623, %v1630
    %v1646 = vcombine.low %v1637, %v1644
    %v1648 = vunpack.c.l.s4 1966171168
    %v1649 = vunpack.c.0.s8 %v1648
    %v1650 = vlaneseq
    %v1651 = vshrl.u32 %v1650, 7
    %v1652 = vsub.s32 %v1649, %v1651
    %v1653 = vrot.slane %v1645, %v1652
    %v1655 = vunpack.c.l.s4 1966171168
    %v1656 = vunpack.c.0.s8 %v1655
    %v1657 = vlaneseq
    %v1658 = vshrl.u32 %v1657, 7
    %v1659 = vsub.s32 %v1656, %v1658
    %v1660 = vrot.slane %v1646, %v1659
    %v1661 = vcombine.low %v1653, %v1660
    %v1662 = vcombine.low %v573, %v577
    %v1663 = vcombine.low %v581, %v585
    %v1664 = vcombine.low %v589, %v593
    %v1665 = vcombine.low %v597, %v601
    %v1667 = vunpack.c.l.s4 1966171168
    %v1668 = vunpack.c.0.s8 %v1667
    %v1669 = vlaneseq
    %v1670 = vshrl.u32 %v1669, 7
    %v1671 = vsub.s32 %v1668, %v1670
    %v1672 = vrot.slane %v1662, %v1671
    %v1674 = vunpack.c.l.s4 1966171168
    %v1675 = vunpack.c.0.s8 %v1674
    %v1676 = vlaneseq
    %v1677 = vshrl.u32 %v1676, 7
    %v1678 = vsub.s32 %v1675, %v1677
    %v1679 = vrot.slane %v1663, %v1678
    %v1681 = vunpack.c.l.s4 1966171168
    %v1682 = vunpack.c.0.s8 %v1681
    %v1683 = vlaneseq
    %v1684 = vshrl.u32 %v1683, 7
    %v1685 = vsub.s32 %v1682, %v1684
    %v1686 = vrot.slane %v1664, %v1685
    %v1688 = vunpack.c.l.s4 1966171168
    %v1689 = vunpack.c.0.s8 %v1688
    %v1690 = vlaneseq
    %v1691 = vshrl.u32 %v1690, 7
    %v1692 = vsub.s32 %v1689, %v1691
    %v1693 = vrot.slane %v1665, %v1692
    %v1694 = vcombine.low %v1672, %v1679
    %v1695 = vcombine.low %v1686, %v1693
    %v1697 = vunpack.c.l.s4 1966171168
    %v1698 = vunpack.c.0.s8 %v1697
    %v1699 = vlaneseq
    %v1700 = vshrl.u32 %v1699, 7
    %v1701 = vsub.s32 %v1698, %v1700
    %v1702 = vrot.slane %v1694, %v1701
    %v1704 = vunpack.c.l.s4 1966171168
    %v1705 = vunpack.c.0.s8 %v1704
    %v1706 = vlaneseq
    %v1707 = vshrl.u32 %v1706, 7
    %v1708 = vsub.s32 %v1705, %v1707
    %v1709 = vrot.slane %v1695, %v1708
    %v1710 = vcombine.low %v1702, %v1709
    %v1711 = vcombine.low %v605, %v609
    %v1712 = vcombine.low %v613, %v617
    %v1713 = vcombine.low %v621, %v625
    %v1714 = vcombine.low %v629, %v633
    %v1716 = vunpack.c.l.s4 1966171168
    %v1717 = vunpack.c.0.s8 %v1716
    %v1718 = vlaneseq
    %v1719 = vshrl.u32 %v1718, 7
    %v1720 = vsub.s32 %v1717, %v1719
    %v1721 = vrot.slane %v1711, %v1720
    %v1723 = vunpack.c.l.s4 1966171168
    %v1724 = vunpack.c.0.s8 %v1723
    %v1725 = vlaneseq
    %v1726 = vshrl.u32 %v1725, 7
    %v1727 = vsub.s32 %v1724, %v1726
    %v1728 = vrot.slane %v1712, %v1727
    %v1730 = vunpack.c.l.s4 1966171168
    %v1731 = vunpack.c.0.s8 %v1730
    %v1732 = vlaneseq
    %v1733 = vshrl.u32 %v1732, 7
    %v1734 = vsub.s32 %v1731, %v1733
    %v1735 = vrot.slane %v1713, %v1734
    %v1737 = vunpack.c.l.s4 1966171168
    %v1738 = vunpack.c.0.s8 %v1737
    %v1739 = vlaneseq
    %v1740 = vshrl.u32 %v1739, 7
    %v1741 = vsub.s32 %v1738, %v1740
    %v1742 = vrot.slane %v1714, %v1741
    %v1743 = vcombine.low %v1721, %v1728
    %v1744 = vcombine.low %v1735, %v1742
    %v1746 = vunpack.c.l.s4 1966171168
    %v1747 = vunpack.c.0.s8 %v1746
    %v1748 = vlaneseq
    %v1749 = vshrl.u32 %v1748, 7
    %v1750 = vsub.s32 %v1747, %v1749
    %v1751 = vrot.slane %v1743, %v1750
    %v1753 = vunpack.c.l.s4 1966171168
    %v1754 = vunpack.c.0.s8 %v1753
    %v1755 = vlaneseq
    %v1756 = vshrl.u32 %v1755, 7
    %v1757 = vsub.s32 %v1754, %v1756
    %v1758 = vrot.slane %v1744, %v1757
    %v1759 = vcombine.low %v1751, %v1758
    %v1760 = vcombine.low %v637, %v641
    %v1761 = vcombine.low %v645, %v649
    %v1762 = vcombine.low %v653, %v657
    %v1763 = vcombine.low %v661, %v665
    %v1765 = vunpack.c.l.s4 1966171168
    %v1766 = vunpack.c.0.s8 %v1765
    %v1767 = vlaneseq
    %v1768 = vshrl.u32 %v1767, 7
    %v1769 = vsub.s32 %v1766, %v1768
    %v1770 = vrot.slane %v1760, %v1769
    %v1772 = vunpack.c.l.s4 1966171168
    %v1773 = vunpack.c.0.s8 %v1772
    %v1774 = vlaneseq
    %v1775 = vshrl.u32 %v1774, 7
    %v1776 = vsub.s32 %v1773, %v1775
    %v1777 = vrot.slane %v1761, %v1776
    %v1779 = vunpack.c.l.s4 1966171168
    %v1780 = vunpack.c.0.s8 %v1779
    %v1781 = vlaneseq
    %v1782 = vshrl.u32 %v1781, 7
    %v1783 = vsub.s32 %v1780, %v1782
    %v1784 = vrot.slane %v1762, %v1783
    %v1786 = vunpack.c.l.s4 1966171168
    %v1787 = vunpack.c.0.s8 %v1786
    %v1788 = vlaneseq
    %v1789 = vshrl.u32 %v1788, 7
    %v1790 = vsub.s32 %v1787, %v1789
    %v1791 = vrot.slane %v1763, %v1790
    %v1792 = vcombine.low %v1770, %v1777
    %v1793 = vcombine.low %v1784, %v1791
    %v1795 = vunpack.c.l.s4 1966171168
    %v1796 = vunpack.c.0.s8 %v1795
    %v1797 = vlaneseq
    %v1798 = vshrl.u32 %v1797, 7
    %v1799 = vsub.s32 %v1796, %v1798
    %v1800 = vrot.slane %v1792, %v1799
    %v1802 = vunpack.c.l.s4 1966171168
    %v1803 = vunpack.c.0.s8 %v1802
    %v1804 = vlaneseq
    %v1805 = vshrl.u32 %v1804, 7
    %v1806 = vsub.s32 %v1803, %v1805
    %v1807 = vrot.slane %v1793, %v1806
    %v1808 = vcombine.low %v1800, %v1807
    %v1809 = vcombine.low %v669, %v673
    %v1810 = vcombine.low %v677, %v681
    %v1811 = vcombine.low %v685, %v689
    %v1812 = vcombine.low %v693, %v697
    %v1814 = vunpack.c.l.s4 1966171168
    %v1815 = vunpack.c.0.s8 %v1814
    %v1816 = vlaneseq
    %v1817 = vshrl.u32 %v1816, 7
    %v1818 = vsub.s32 %v1815, %v1817
    %v1819 = vrot.slane %v1809, %v1818
    %v1821 = vunpack.c.l.s4 1966171168
    %v1822 = vunpack.c.0.s8 %v1821
    %v1823 = vlaneseq
    %v1824 = vshrl.u32 %v1823, 7
    %v1825 = vsub.s32 %v1822, %v1824
    %v1826 = vrot.slane %v1810, %v1825
    %v1828 = vunpack.c.l.s4 1966171168
    %v1829 = vunpack.c.0.s8 %v1828
    %v1830 = vlaneseq
    %v1831 = vshrl.u32 %v1830, 7
    %v1832 = vsub.s32 %v1829, %v1831
    %v1833 = vrot.slane %v1811, %v1832
    %v1835 = vunpack.c.l.s4 1966171168
    %v1836 = vunpack.c.0.s8 %v1835
    %v1837 = vlaneseq
    %v1838 = vshrl.u32 %v1837, 7
    %v1839 = vsub.s32 %v1836, %v1838
    %v1840 = vrot.slane %v1812, %v1839
    %v1841 = vcombine.low %v1819, %v1826
    %v1842 = vcombine.low %v1833, %v1840
    %v1844 = vunpack.c.l.s4 1966171168
    %v1845 = vunpack.c.0.s8 %v1844
    %v1846 = vlaneseq
    %v1847 = vshrl.u32 %v1846, 7
    %v1848 = vsub.s32 %v1845, %v1847
    %v1849 = vrot.slane %v1841, %v1848
    %v1851 = vunpack.c.l.s4 1966171168
    %v1852 = vunpack.c.0.s8 %v1851
    %v1853 = vlaneseq
    %v1854 = vshrl.u32 %v1853, 7
    %v1855 = vsub.s32 %v1852, %v1854
    %v1856 = vrot.slane %v1842, %v1855
    %v1857 = vcombine.low %v1849, %v1856
    %v1858 = vcombine.low %v701, %v705
    %v1859 = vcombine.low %v709, %v713
    %v1860 = vcombine.low %v717, %v721
    %v1861 = vcombine.low %v725, %v729
    %v1863 = vunpack.c.l.s4 1966171168
    %v1864 = vunpack.c.0.s8 %v1863
    %v1865 = vlaneseq
    %v1866 = vshrl.u32 %v1865, 7
    %v1867 = vsub.s32 %v1864, %v1866
    %v1868 = vrot.slane %v1858, %v1867
    %v1870 = vunpack.c.l.s4 1966171168
    %v1871 = vunpack.c.0.s8 %v1870
    %v1872 = vlaneseq
    %v1873 = vshrl.u32 %v1872, 7
    %v1874 = vsub.s32 %v1871, %v1873
    %v1875 = vrot.slane %v1859, %v1874
    %v1877 = vunpack.c.l.s4 1966171168
    %v1878 = vunpack.c.0.s8 %v1877
    %v1879 = vlaneseq
    %v1880 = vshrl.u32 %v1879, 7
    %v1881 = vsub.s32 %v1878, %v1880
    %v1882 = vrot.slane %v1860, %v1881
    %v1884 = vunpack.c.l.s4 1966171168
    %v1885 = vunpack.c.0.s8 %v1884
    %v1886 = vlaneseq
    %v1887 = vshrl.u32 %v1886, 7
    %v1888 = vsub.s32 %v1885, %v1887
    %v1889 = vrot.slane %v1861, %v1888
    %v1890 = vcombine.low %v1868, %v1875
    %v1891 = vcombine.low %v1882, %v1889
    %v1893 = vunpack.c.l.s4 1966171168
    %v1894 = vunpack.c.0.s8 %v1893
    %v1895 = vlaneseq
    %v1896 = vshrl.u32 %v1895, 7
    %v1897 = vsub.s32 %v1894, %v1896
    %v1898 = vrot.slane %v1890, %v1897
    %v1900 = vunpack.c.l.s4 1966171168
    %v1901 = vunpack.c.0.s8 %v1900
    %v1902 = vlaneseq
    %v1903 = vshrl.u32 %v1902, 7
    %v1904 = vsub.s32 %v1901, %v1903
    %v1905 = vrot.slane %v1891, %v1904
    %v1906 = vcombine.low %v1898, %v1905
    %v1907 = vcombine.low %v733, %v737
    %v1908 = vcombine.low %v741, %v745
    %v1909 = vcombine.low %v749, %v753
    %v1910 = vcombine.low %v757, %v761
    %v1912 = vunpack.c.l.s4 1966171168
    %v1913 = vunpack.c.0.s8 %v1912
    %v1914 = vlaneseq
    %v1915 = vshrl.u32 %v1914, 7
    %v1916 = vsub.s32 %v1913, %v1915
    %v1917 = vrot.slane %v1907, %v1916
    %v1919 = vunpack.c.l.s4 1966171168
    %v1920 = vunpack.c.0.s8 %v1919
    %v1921 = vlaneseq
    %v1922 = vshrl.u32 %v1921, 7
    %v1923 = vsub.s32 %v1920, %v1922
    %v1924 = vrot.slane %v1908, %v1923
    %v1926 = vunpack.c.l.s4 1966171168
    %v1927 = vunpack.c.0.s8 %v1926
    %v1928 = vlaneseq
    %v1929 = vshrl.u32 %v1928, 7
    %v1930 = vsub.s32 %v1927, %v1929
    %v1931 = vrot.slane %v1909, %v1930
    %v1933 = vunpack.c.l.s4 1966171168
    %v1934 = vunpack.c.0.s8 %v1933
    %v1935 = vlaneseq
    %v1936 = vshrl.u32 %v1935, 7
    %v1937 = vsub.s32 %v1934, %v1936
    %v1938 = vrot.slane %v1910, %v1937
    %v1939 = vcombine.low %v1917, %v1924
    %v1940 = vcombine.low %v1931, %v1938
    %v1942 = vunpack.c.l.s4 1966171168
    %v1943 = vunpack.c.0.s8 %v1942
    %v1944 = vlaneseq
    %v1945 = vshrl.u32 %v1944, 7
    %v1946 = vsub.s32 %v1943, %v1945
    %v1947 = vrot.slane %v1939, %v1946
    %v1949 = vunpack.c.l.s4 1966171168
    %v1950 = vunpack.c.0.s8 %v1949
    %v1951 = vlaneseq
    %v1952 = vshrl.u32 %v1951, 7
    %v1953 = vsub.s32 %v1950, %v1952
    %v1954 = vrot.slane %v1940, %v1953
    %v1955 = vcombine.low %v1947, %v1954
    %v1956 = vcombine.low %v765, %v769
    %v1957 = vcombine.low %v773, %v777
    %v1958 = vcombine.low %v781, %v785
    %v1959 = vcombine.low %v789, %v793
    %v1961 = vunpack.c.l.s4 1966171168
    %v1962 = vunpack.c.0.s8 %v1961
    %v1963 = vlaneseq
    %v1964 = vshrl.u32 %v1963, 7
    %v1965 = vsub.s32 %v1962, %v1964
    %v1966 = vrot.slane %v1956, %v1965
    %v1968 = vunpack.c.l.s4 1966171168
    %v1969 = vunpack.c.0.s8 %v1968
    %v1970 = vlaneseq
    %v1971 = vshrl.u32 %v1970, 7
    %v1972 = vsub.s32 %v1969, %v1971
    %v1973 = vrot.slane %v1957, %v1972
    %v1975 = vunpack.c.l.s4 1966171168
    %v1976 = vunpack.c.0.s8 %v1975
    %v1977 = vlaneseq
    %v1978 = vshrl.u32 %v1977, 7
    %v1979 = vsub.s32 %v1976, %v1978
    %v1980 = vrot.slane %v1958, %v1979
    %v1982 = vunpack.c.l.s4 1966171168
    %v1983 = vunpack.c.0.s8 %v1982
    %v1984 = vlaneseq
    %v1985 = vshrl.u32 %v1984, 7
    %v1986 = vsub.s32 %v1983, %v1985
    %v1987 = vrot.slane %v1959, %v1986
    %v1988 = vcombine.low %v1966, %v1973
    %v1989 = vcombine.low %v1980, %v1987
    %v1991 = vunpack.c.l.s4 1966171168
    %v1992 = vunpack.c.0.s8 %v1991
    %v1993 = vlaneseq
    %v1994 = vshrl.u32 %v1993, 7
    %v1995 = vsub.s32 %v1992, %v1994
    %v1996 = vrot.slane %v1988, %v1995
    %v1998 = vunpack.c.l.s4 1966171168
    %v1999 = vunpack.c.0.s8 %v1998
    %v2000 = vlaneseq
    %v2001 = vshrl.u32 %v2000, 7
    %v2002 = vsub.s32 %v1999, %v2001
    %v2003 = vrot.slane %v1989, %v2002
    %v2004 = vcombine.low %v1996, %v2003
    %v2005 = vcombine.low %v797, %v801
    %v2006 = vcombine.low %v805, %v809
    %v2007 = vcombine.low %v813, %v817
    %v2008 = vcombine.low %v821, %v825
    %v2010 = vunpack.c.l.s4 1966171168
    %v2011 = vunpack.c.0.s8 %v2010
    %v2012 = vlaneseq
    %v2013 = vshrl.u32 %v2012, 7
    %v2014 = vsub.s32 %v2011, %v2013
    %v2015 = vrot.slane %v2005, %v2014
    %v2017 = vunpack.c.l.s4 1966171168
    %v2018 = vunpack.c.0.s8 %v2017
    %v2019 = vlaneseq
    %v2020 = vshrl.u32 %v2019, 7
    %v2021 = vsub.s32 %v2018, %v2020
    %v2022 = vrot.slane %v2006, %v2021
    %v2024 = vunpack.c.l.s4 1966171168
    %v2025 = vunpack.c.0.s8 %v2024
    %v2026 = vlaneseq
    %v2027 = vshrl.u32 %v2026, 7
    %v2028 = vsub.s32 %v2025, %v2027
    %v2029 = vrot.slane %v2007, %v2028
    %v2031 = vunpack.c.l.s4 1966171168
    %v2032 = vunpack.c.0.s8 %v2031
    %v2033 = vlaneseq
    %v2034 = vshrl.u32 %v2033, 7
    %v2035 = vsub.s32 %v2032, %v2034
    %v2036 = vrot.slane %v2008, %v2035
    %v2037 = vcombine.low %v2015, %v2022
    %v2038 = vcombine.low %v2029, %v2036
    %v2040 = vunpack.c.l.s4 1966171168
    %v2041 = vunpack.c.0.s8 %v2040
    %v2042 = vlaneseq
    %v2043 = vshrl.u32 %v2042, 7
    %v2044 = vsub.s32 %v2041, %v2043
    %v2045 = vrot.slane %v2037, %v2044
    %v2047 = vunpack.c.l.s4 1966171168
    %v2048 = vunpack.c.0.s8 %v2047
    %v2049 = vlaneseq
    %v2050 = vshrl.u32 %v2049, 7
    %v2051 = vsub.s32 %v2048, %v2050
    %v2052 = vrot.slane %v2038, %v2051
    %v2053 = vcombine.low %v2045, %v2052
    %v2054 = vcombine.low %v829, %v833
    %v2055 = vcombine.low %v837, %v841
    %v2056 = vcombine.low %v845, %v849
    %v2057 = vcombine.low %v853, %v857
    %v2059 = vunpack.c.l.s4 1966171168
    %v2060 = vunpack.c.0.s8 %v2059
    %v2061 = vlaneseq
    %v2062 = vshrl.u32 %v2061, 7
    %v2063 = vsub.s32 %v2060, %v2062
    %v2064 = vrot.slane %v2054, %v2063
    %v2066 = vunpack.c.l.s4 1966171168
    %v2067 = vunpack.c.0.s8 %v2066
    %v2068 = vlaneseq
    %v2069 = vshrl.u32 %v2068, 7
    %v2070 = vsub.s32 %v2067, %v2069
    %v2071 = vrot.slane %v2055, %v2070
    %v2073 = vunpack.c.l.s4 1966171168
    %v2074 = vunpack.c.0.s8 %v2073
    %v2075 = vlaneseq
    %v2076 = vshrl.u32 %v2075, 7
    %v2077 = vsub.s32 %v2074, %v2076
    %v2078 = vrot.slane %v2056, %v2077
    %v2080 = vunpack.c.l.s4 1966171168
    %v2081 = vunpack.c.0.s8 %v2080
    %v2082 = vlaneseq
    %v2083 = vshrl.u32 %v2082, 7
    %v2084 = vsub.s32 %v2081, %v2083
    %v2085 = vrot.slane %v2057, %v2084
    %v2086 = vcombine.low %v2064, %v2071
    %v2087 = vcombine.low %v2078, %v2085
    %v2089 = vunpack.c.l.s4 1966171168
    %v2090 = vunpack.c.0.s8 %v2089
    %v2091 = vlaneseq
    %v2092 = vshrl.u32 %v2091, 7
    %v2093 = vsub.s32 %v2090, %v2092
    %v2094 = vrot.slane %v2086, %v2093
    %v2096 = vunpack.c.l.s4 1966171168
    %v2097 = vunpack.c.0.s8 %v2096
    %v2098 = vlaneseq
    %v2099 = vshrl.u32 %v2098, 7
    %v2100 = vsub.s32 %v2097, %v2099
    %v2101 = vrot.slane %v2087, %v2100
    %v2102 = vcombine.low %v2094, %v2101
    %v2103 = vcombine.low %v861, %v865
    %v2104 = vcombine.low %v869, %v873
    %v2105 = vcombine.low %v877, %v881
    %v2106 = vcombine.low %v885, %v889
    %v2108 = vunpack.c.l.s4 1966171168
    %v2109 = vunpack.c.0.s8 %v2108
    %v2110 = vlaneseq
    %v2111 = vshrl.u32 %v2110, 7
    %v2112 = vsub.s32 %v2109, %v2111
    %v2113 = vrot.slane %v2103, %v2112
    %v2115 = vunpack.c.l.s4 1966171168
    %v2116 = vunpack.c.0.s8 %v2115
    %v2117 = vlaneseq
    %v2118 = vshrl.u32 %v2117, 7
    %v2119 = vsub.s32 %v2116, %v2118
    %v2120 = vrot.slane %v2104, %v2119
    %v2122 = vunpack.c.l.s4 1966171168
    %v2123 = vunpack.c.0.s8 %v2122
    %v2124 = vlaneseq
    %v2125 = vshrl.u32 %v2124, 7
    %v2126 = vsub.s32 %v2123, %v2125
    %v2127 = vrot.slane %v2105, %v2126
    %v2129 = vunpack.c.l.s4 1966171168
    %v2130 = vunpack.c.0.s8 %v2129
    %v2131 = vlaneseq
    %v2132 = vshrl.u32 %v2131, 7
    %v2133 = vsub.s32 %v2130, %v2132
    %v2134 = vrot.slane %v2106, %v2133
    %v2135 = vcombine.low %v2113, %v2120
    %v2136 = vcombine.low %v2127, %v2134
    %v2138 = vunpack.c.l.s4 1966171168
    %v2139 = vunpack.c.0.s8 %v2138
    %v2140 = vlaneseq
    %v2141 = vshrl.u32 %v2140, 7
    %v2142 = vsub.s32 %v2139, %v2141
    %v2143 = vrot.slane %v2135, %v2142
    %v2145 = vunpack.c.l.s4 1966171168
    %v2146 = vunpack.c.0.s8 %v2145
    %v2147 = vlaneseq
    %v2148 = vshrl.u32 %v2147, 7
    %v2149 = vsub.s32 %v2146, %v2148
    %v2150 = vrot.slane %v2136, %v2149
    %v2151 = vcombine.low %v2143, %v2150
    %v2152 = vcombine.low %v893, %v897
    %v2153 = vcombine.low %v901, %v905
    %v2154 = vcombine.low %v909, %v913
    %v2155 = vcombine.low %v917, %v921
    %v2157 = vunpack.c.l.s4 1966171168
    %v2158 = vunpack.c.0.s8 %v2157
    %v2159 = vlaneseq
    %v2160 = vshrl.u32 %v2159, 7
    %v2161 = vsub.s32 %v2158, %v2160
    %v2162 = vrot.slane %v2152, %v2161
    %v2164 = vunpack.c.l.s4 1966171168
    %v2165 = vunpack.c.0.s8 %v2164
    %v2166 = vlaneseq
    %v2167 = vshrl.u32 %v2166, 7
    %v2168 = vsub.s32 %v2165, %v2167
    %v2169 = vrot.slane %v2153, %v2168
    %v2171 = vunpack.c.l.s4 1966171168
    %v2172 = vunpack.c.0.s8 %v2171
    %v2173 = vlaneseq
    %v2174 = vshrl.u32 %v2173, 7
    %v2175 = vsub.s32 %v2172, %v2174
    %v2176 = vrot.slane %v2154, %v2175
    %v2178 = vunpack.c.l.s4 1966171168
    %v2179 = vunpack.c.0.s8 %v2178
    %v2180 = vlaneseq
    %v2181 = vshrl.u32 %v2180, 7
    %v2182 = vsub.s32 %v2179, %v2181
    %v2183 = vrot.slane %v2155, %v2182
    %v2184 = vcombine.low %v2162, %v2169
    %v2185 = vcombine.low %v2176, %v2183
    %v2187 = vunpack.c.l.s4 1966171168
    %v2188 = vunpack.c.0.s8 %v2187
    %v2189 = vlaneseq
    %v2190 = vshrl.u32 %v2189, 7
    %v2191 = vsub.s32 %v2188, %v2190
    %v2192 = vrot.slane %v2184, %v2191
    %v2194 = vunpack.c.l.s4 1966171168
    %v2195 = vunpack.c.0.s8 %v2194
    %v2196 = vlaneseq
    %v2197 = vshrl.u32 %v2196, 7
    %v2198 = vsub.s32 %v2195, %v2197
    %v2199 = vrot.slane %v2185, %v2198
    %v2200 = vcombine.low %v2192, %v2199
    %v2201 = vcombine.low %v925, %v929
    %v2202 = vcombine.low %v933, %v937
    %v2203 = vcombine.low %v941, %v945
    %v2204 = vcombine.low %v949, %v953
    %v2206 = vunpack.c.l.s4 1966171168
    %v2207 = vunpack.c.0.s8 %v2206
    %v2208 = vlaneseq
    %v2209 = vshrl.u32 %v2208, 7
    %v2210 = vsub.s32 %v2207, %v2209
    %v2211 = vrot.slane %v2201, %v2210
    %v2213 = vunpack.c.l.s4 1966171168
    %v2214 = vunpack.c.0.s8 %v2213
    %v2215 = vlaneseq
    %v2216 = vshrl.u32 %v2215, 7
    %v2217 = vsub.s32 %v2214, %v2216
    %v2218 = vrot.slane %v2202, %v2217
    %v2220 = vunpack.c.l.s4 1966171168
    %v2221 = vunpack.c.0.s8 %v2220
    %v2222 = vlaneseq
    %v2223 = vshrl.u32 %v2222, 7
    %v2224 = vsub.s32 %v2221, %v2223
    %v2225 = vrot.slane %v2203, %v2224
    %v2227 = vunpack.c.l.s4 1966171168
    %v2228 = vunpack.c.0.s8 %v2227
    %v2229 = vlaneseq
    %v2230 = vshrl.u32 %v2229, 7
    %v2231 = vsub.s32 %v2228, %v2230
    %v2232 = vrot.slane %v2204, %v2231
    %v2233 = vcombine.low %v2211, %v2218
    %v2234 = vcombine.low %v2225, %v2232
    %v2236 = vunpack.c.l.s4 1966171168
    %v2237 = vunpack.c.0.s8 %v2236
    %v2238 = vlaneseq
    %v2239 = vshrl.u32 %v2238, 7
    %v2240 = vsub.s32 %v2237, %v2239
    %v2241 = vrot.slane %v2233, %v2240
    %v2243 = vunpack.c.l.s4 1966171168
    %v2244 = vunpack.c.0.s8 %v2243
    %v2245 = vlaneseq
    %v2246 = vshrl.u32 %v2245, 7
    %v2247 = vsub.s32 %v2244, %v2246
    %v2248 = vrot.slane %v2234, %v2247
    %v2249 = vcombine.low %v2241, %v2248
    %v2250 = vcombine.low %v957, %v961
    %v2251 = vcombine.low %v965, %v969
    %v2252 = vcombine.low %v973, %v977
    %v2253 = vcombine.low %v981, %v985
    %v2255 = vunpack.c.l.s4 1966171168
    %v2256 = vunpack.c.0.s8 %v2255
    %v2257 = vlaneseq
    %v2258 = vshrl.u32 %v2257, 7
    %v2259 = vsub.s32 %v2256, %v2258
    %v2260 = vrot.slane %v2250, %v2259
    %v2262 = vunpack.c.l.s4 1966171168
    %v2263 = vunpack.c.0.s8 %v2262
    %v2264 = vlaneseq
    %v2265 = vshrl.u32 %v2264, 7
    %v2266 = vsub.s32 %v2263, %v2265
    %v2267 = vrot.slane %v2251, %v2266
    %v2269 = vunpack.c.l.s4 1966171168
    %v2270 = vunpack.c.0.s8 %v2269
    %v2271 = vlaneseq
    %v2272 = vshrl.u32 %v2271, 7
    %v2273 = vsub.s32 %v2270, %v2272
    %v2274 = vrot.slane %v2252, %v2273
    %v2276 = vunpack.c.l.s4 1966171168
    %v2277 = vunpack.c.0.s8 %v2276
    %v2278 = vlaneseq
    %v2279 = vshrl.u32 %v2278, 7
    %v2280 = vsub.s32 %v2277, %v2279
    %v2281 = vrot.slane %v2253, %v2280
    %v2282 = vcombine.low %v2260, %v2267
    %v2283 = vcombine.low %v2274, %v2281
    %v2285 = vunpack.c.l.s4 1966171168
    %v2286 = vunpack.c.0.s8 %v2285
    %v2287 = vlaneseq
    %v2288 = vshrl.u32 %v2287, 7
    %v2289 = vsub.s32 %v2286, %v2288
    %v2290 = vrot.slane %v2282, %v2289
    %v2292 = vunpack.c.l.s4 1966171168
    %v2293 = vunpack.c.0.s8 %v2292
    %v2294 = vlaneseq
    %v2295 = vshrl.u32 %v2294, 7
    %v2296 = vsub.s32 %v2293, %v2295
    %v2297 = vrot.slane %v2283, %v2296
    %v2298 = vcombine.low %v2290, %v2297
    %v2299 = vcombine.low %v989, %v993
    %v2300 = vcombine.low %v997, %v1001
    %v2301 = vcombine.low %v1005, %v1009
    %v2302 = vcombine.low %v1013, %v1017
    %v2304 = vunpack.c.l.s4 1966171168
    %v2305 = vunpack.c.0.s8 %v2304
    %v2306 = vlaneseq
    %v2307 = vshrl.u32 %v2306, 7
    %v2308 = vsub.s32 %v2305, %v2307
    %v2309 = vrot.slane %v2299, %v2308
    %v2311 = vunpack.c.l.s4 1966171168
    %v2312 = vunpack.c.0.s8 %v2311
    %v2313 = vlaneseq
    %v2314 = vshrl.u32 %v2313, 7
    %v2315 = vsub.s32 %v2312, %v2314
    %v2316 = vrot.slane %v2300, %v2315
    %v2318 = vunpack.c.l.s4 1966171168
    %v2319 = vunpack.c.0.s8 %v2318
    %v2320 = vlaneseq
    %v2321 = vshrl.u32 %v2320, 7
    %v2322 = vsub.s32 %v2319, %v2321
    %v2323 = vrot.slane %v2301, %v2322
    %v2325 = vunpack.c.l.s4 1966171168
    %v2326 = vunpack.c.0.s8 %v2325
    %v2327 = vlaneseq
    %v2328 = vshrl.u32 %v2327, 7
    %v2329 = vsub.s32 %v2326, %v2328
    %v2330 = vrot.slane %v2302, %v2329
    %v2331 = vcombine.low %v2309, %v2316
    %v2332 = vcombine.low %v2323, %v2330
    %v2334 = vunpack.c.l.s4 1966171168
    %v2335 = vunpack.c.0.s8 %v2334
    %v2336 = vlaneseq
    %v2337 = vshrl.u32 %v2336, 7
    %v2338 = vsub.s32 %v2335, %v2337
    %v2339 = vrot.slane %v2331, %v2338
    %v2341 = vunpack.c.l.s4 1966171168
    %v2342 = vunpack.c.0.s8 %v2341
    %v2343 = vlaneseq
    %v2344 = vshrl.u32 %v2343, 7
    %v2345 = vsub.s32 %v2342, %v2344
    %v2346 = vrot.slane %v2332, %v2345
    %v2347 = vcombine.low %v2339, %v2346
    %v2348 = vcombine.low %v1021, %v1025
    %v2349 = vcombine.low %v1029, %v1033
    %v2350 = vcombine.low %v1037, %v1041
    %v2351 = vcombine.low %v1045, %v1049
    %v2353 = vunpack.c.l.s4 1966171168
    %v2354 = vunpack.c.0.s8 %v2353
    %v2355 = vlaneseq
    %v2356 = vshrl.u32 %v2355, 7
    %v2357 = vsub.s32 %v2354, %v2356
    %v2358 = vrot.slane %v2348, %v2357
    %v2360 = vunpack.c.l.s4 1966171168
    %v2361 = vunpack.c.0.s8 %v2360
    %v2362 = vlaneseq
    %v2363 = vshrl.u32 %v2362, 7
    %v2364 = vsub.s32 %v2361, %v2363
    %v2365 = vrot.slane %v2349, %v2364
    %v2367 = vunpack.c.l.s4 1966171168
    %v2368 = vunpack.c.0.s8 %v2367
    %v2369 = vlaneseq
    %v2370 = vshrl.u32 %v2369, 7
    %v2371 = vsub.s32 %v2368, %v2370
    %v2372 = vrot.slane %v2350, %v2371
    %v2374 = vunpack.c.l.s4 1966171168
    %v2375 = vunpack.c.0.s8 %v2374
    %v2376 = vlaneseq
    %v2377 = vshrl.u32 %v2376, 7
    %v2378 = vsub.s32 %v2375, %v2377
    %v2379 = vrot.slane %v2351, %v2378
    %v2380 = vcombine.low %v2358, %v2365
    %v2381 = vcombine.low %v2372, %v2379
    %v2383 = vunpack.c.l.s4 1966171168
    %v2384 = vunpack.c.0.s8 %v2383
    %v2385 = vlaneseq
    %v2386 = vshrl.u32 %v2385, 7
    %v2387 = vsub.s32 %v2384, %v2386
    %v2388 = vrot.slane %v2380, %v2387
    %v2390 = vunpack.c.l.s4 1966171168
    %v2391 = vunpack.c.0.s8 %v2390
    %v2392 = vlaneseq
    %v2393 = vshrl.u32 %v2392, 7
    %v2394 = vsub.s32 %v2391, %v2393
    %v2395 = vrot.slane %v2381, %v2394
    %v2396 = vcombine.low %v2388, %v2395
    %v2397 = vcombine.low %v1053, %v1057
    %v2398 = vcombine.low %v1061, %v1065
    %v2399 = vcombine.low %v1069, %v1073
    %v2400 = vcombine.low %v1077, %v1081
    %v2402 = vunpack.c.l.s4 1966171168
    %v2403 = vunpack.c.0.s8 %v2402
    %v2404 = vlaneseq
    %v2405 = vshrl.u32 %v2404, 7
    %v2406 = vsub.s32 %v2403, %v2405
    %v2407 = vrot.slane %v2397, %v2406
    %v2409 = vunpack.c.l.s4 1966171168
    %v2410 = vunpack.c.0.s8 %v2409
    %v2411 = vlaneseq
    %v2412 = vshrl.u32 %v2411, 7
    %v2413 = vsub.s32 %v2410, %v2412
    %v2414 = vrot.slane %v2398, %v2413
    %v2416 = vunpack.c.l.s4 1966171168
    %v2417 = vunpack.c.0.s8 %v2416
    %v2418 = vlaneseq
    %v2419 = vshrl.u32 %v2418, 7
    %v2420 = vsub.s32 %v2417, %v2419
    %v2421 = vrot.slane %v2399, %v2420
    %v2423 = vunpack.c.l.s4 1966171168
    %v2424 = vunpack.c.0.s8 %v2423
    %v2425 = vlaneseq
    %v2426 = vshrl.u32 %v2425, 7
    %v2427 = vsub.s32 %v2424, %v2426
    %v2428 = vrot.slane %v2400, %v2427
    %v2429 = vcombine.low %v2407, %v2414
    %v2430 = vcombine.low %v2421, %v2428
    %v2432 = vunpack.c.l.s4 1966171168
    %v2433 = vunpack.c.0.s8 %v2432
    %v2434 = vlaneseq
    %v2435 = vshrl.u32 %v2434, 7
    %v2436 = vsub.s32 %v2433, %v2435
    %v2437 = vrot.slane %v2429, %v2436
    %v2439 = vunpack.c.l.s4 1966171168
    %v2440 = vunpack.c.0.s8 %v2439
    %v2441 = vlaneseq
    %v2442 = vshrl.u32 %v2441, 7
    %v2443 = vsub.s32 %v2440, %v2442
    %v2444 = vrot.slane %v2430, %v2443
    %v2445 = vcombine.low %v2437, %v2444
    %v2446 = vcombine.low %v1085, %v1089
    %v2447 = vcombine.low %v1093, %v1097
    %v2448 = vcombine.low %v1101, %v1105
    %v2449 = vcombine.low %v1109, %v1113
    %v2451 = vunpack.c.l.s4 1966171168
    %v2452 = vunpack.c.0.s8 %v2451
    %v2453 = vlaneseq
    %v2454 = vshrl.u32 %v2453, 7
    %v2455 = vsub.s32 %v2452, %v2454
    %v2456 = vrot.slane %v2446, %v2455
    %v2458 = vunpack.c.l.s4 1966171168
    %v2459 = vunpack.c.0.s8 %v2458
    %v2460 = vlaneseq
    %v2461 = vshrl.u32 %v2460, 7
    %v2462 = vsub.s32 %v2459, %v2461
    %v2463 = vrot.slane %v2447, %v2462
    %v2465 = vunpack.c.l.s4 1966171168
    %v2466 = vunpack.c.0.s8 %v2465
    %v2467 = vlaneseq
    %v2468 = vshrl.u32 %v2467, 7
    %v2469 = vsub.s32 %v2466, %v2468
    %v2470 = vrot.slane %v2448, %v2469
    %v2472 = vunpack.c.l.s4 1966171168
    %v2473 = vunpack.c.0.s8 %v2472
    %v2474 = vlaneseq
    %v2475 = vshrl.u32 %v2474, 7
    %v2476 = vsub.s32 %v2473, %v2475
    %v2477 = vrot.slane %v2449, %v2476
    %v2478 = vcombine.low %v2456, %v2463
    %v2479 = vcombine.low %v2470, %v2477
    %v2481 = vunpack.c.l.s4 1966171168
    %v2482 = vunpack.c.0.s8 %v2481
    %v2483 = vlaneseq
    %v2484 = vshrl.u32 %v2483, 7
    %v2485 = vsub.s32 %v2482, %v2484
    %v2486 = vrot.slane %v2478, %v2485
    %v2488 = vunpack.c.l.s4 1966171168
    %v2489 = vunpack.c.0.s8 %v2488
    %v2490 = vlaneseq
    %v2491 = vshrl.u32 %v2490, 7
    %v2492 = vsub.s32 %v2489, %v2491
    %v2493 = vrot.slane %v2479, %v2492
    %v2494 = vcombine.low %v2486, %v2493
    %v2495 = vcombine.low %v1117, %v1121
    %v2496 = vcombine.low %v1125, %v1129
    %v2497 = vcombine.low %v1133, %v1137
    %v2498 = vcombine.low %v1141, %v1145
    %v2500 = vunpack.c.l.s4 1966171168
    %v2501 = vunpack.c.0.s8 %v2500
    %v2502 = vlaneseq
    %v2503 = vshrl.u32 %v2502, 7
    %v2504 = vsub.s32 %v2501, %v2503
    %v2505 = vrot.slane %v2495, %v2504
    %v2507 = vunpack.c.l.s4 1966171168
    %v2508 = vunpack.c.0.s8 %v2507
    %v2509 = vlaneseq
    %v2510 = vshrl.u32 %v2509, 7
    %v2511 = vsub.s32 %v2508, %v2510
    %v2512 = vrot.slane %v2496, %v2511
    %v2514 = vunpack.c.l.s4 1966171168
    %v2515 = vunpack.c.0.s8 %v2514
    %v2516 = vlaneseq
    %v2517 = vshrl.u32 %v2516, 7
    %v2518 = vsub.s32 %v2515, %v2517
    %v2519 = vrot.slane %v2497, %v2518
    %v2521 = vunpack.c.l.s4 1966171168
    %v2522 = vunpack.c.0.s8 %v2521
    %v2523 = vlaneseq
    %v2524 = vshrl.u32 %v2523, 7
    %v2525 = vsub.s32 %v2522, %v2524
    %v2526 = vrot.slane %v2498, %v2525
    %v2527 = vcombine.low %v2505, %v2512
    %v2528 = vcombine.low %v2519, %v2526
    %v2530 = vunpack.c.l.s4 1966171168
    %v2531 = vunpack.c.0.s8 %v2530
    %v2532 = vlaneseq
    %v2533 = vshrl.u32 %v2532, 7
    %v2534 = vsub.s32 %v2531, %v2533
    %v2535 = vrot.slane %v2527, %v2534
    %v2537 = vunpack.c.l.s4 1966171168
    %v2538 = vunpack.c.0.s8 %v2537
    %v2539 = vlaneseq
    %v2540 = vshrl.u32 %v2539, 7
    %v2541 = vsub.s32 %v2538, %v2540
    %v2542 = vrot.slane %v2528, %v2541
    %v2543 = vcombine.low %v2535, %v2542
    %v2544 = vcombine.low %v1149, %v1153
    %v2545 = vcombine.low %v1157, %v1161
    %v2546 = vcombine.low %v1165, %v1169
    %v2547 = vcombine.low %v1173, %v1177
    %v2549 = vunpack.c.l.s4 1966171168
    %v2550 = vunpack.c.0.s8 %v2549
    %v2551 = vlaneseq
    %v2552 = vshrl.u32 %v2551, 7
    %v2553 = vsub.s32 %v2550, %v2552
    %v2554 = vrot.slane %v2544, %v2553
    %v2556 = vunpack.c.l.s4 1966171168
    %v2557 = vunpack.c.0.s8 %v2556
    %v2558 = vlaneseq
    %v2559 = vshrl.u32 %v2558, 7
    %v2560 = vsub.s32 %v2557, %v2559
    %v2561 = vrot.slane %v2545, %v2560
    %v2563 = vunpack.c.l.s4 1966171168
    %v2564 = vunpack.c.0.s8 %v2563
    %v2565 = vlaneseq
    %v2566 = vshrl.u32 %v2565, 7
    %v2567 = vsub.s32 %v2564, %v2566
    %v2568 = vrot.slane %v2546, %v2567
    %v2570 = vunpack.c.l.s4 1966171168
    %v2571 = vunpack.c.0.s8 %v2570
    %v2572 = vlaneseq
    %v2573 = vshrl.u32 %v2572, 7
    %v2574 = vsub.s32 %v2571, %v2573
    %v2575 = vrot.slane %v2547, %v2574
    %v2576 = vcombine.low %v2554, %v2561
    %v2577 = vcombine.low %v2568, %v2575
    %v2579 = vunpack.c.l.s4 1966171168
    %v2580 = vunpack.c.0.s8 %v2579
    %v2581 = vlaneseq
    %v2582 = vshrl.u32 %v2581, 7
    %v2583 = vsub.s32 %v2580, %v2582
    %v2584 = vrot.slane %v2576, %v2583
    %v2586 = vunpack.c.l.s4 1966171168
    %v2587 = vunpack.c.0.s8 %v2586
    %v2588 = vlaneseq
    %v2589 = vshrl.u32 %v2588, 7
    %v2590 = vsub.s32 %v2587, %v2589
    %v2591 = vrot.slane %v2577, %v2590
    %v2592 = vcombine.low %v2584, %v2591
    %v2593 = vcombine.low %v1181, %v1185
    %v2594 = vcombine.low %v1189, %v1193
    %v2595 = vcombine.low %v1197, %v1201
    %v2596 = vcombine.low %v1205, %v1209
    %v2598 = vunpack.c.l.s4 1966171168
    %v2599 = vunpack.c.0.s8 %v2598
    %v2600 = vlaneseq
    %v2601 = vshrl.u32 %v2600, 7
    %v2602 = vsub.s32 %v2599, %v2601
    %v2603 = vrot.slane %v2593, %v2602
    %v2605 = vunpack.c.l.s4 1966171168
    %v2606 = vunpack.c.0.s8 %v2605
    %v2607 = vlaneseq
    %v2608 = vshrl.u32 %v2607, 7
    %v2609 = vsub.s32 %v2606, %v2608
    %v2610 = vrot.slane %v2594, %v2609
    %v2612 = vunpack.c.l.s4 1966171168
    %v2613 = vunpack.c.0.s8 %v2612
    %v2614 = vlaneseq
    %v2615 = vshrl.u32 %v2614, 7
    %v2616 = vsub.s32 %v2613, %v2615
    %v2617 = vrot.slane %v2595, %v2616
    %v2619 = vunpack.c.l.s4 1966171168
    %v2620 = vunpack.c.0.s8 %v2619
    %v2621 = vlaneseq
    %v2622 = vshrl.u32 %v2621, 7
    %v2623 = vsub.s32 %v2620, %v2622
    %v2624 = vrot.slane %v2596, %v2623
    %v2625 = vcombine.low %v2603, %v2610
    %v2626 = vcombine.low %v2617, %v2624
    %v2628 = vunpack.c.l.s4 1966171168
    %v2629 = vunpack.c.0.s8 %v2628
    %v2630 = vlaneseq
    %v2631 = vshrl.u32 %v2630, 7
    %v2632 = vsub.s32 %v2629, %v2631
    %v2633 = vrot.slane %v2625, %v2632
    %v2635 = vunpack.c.l.s4 1966171168
    %v2636 = vunpack.c.0.s8 %v2635
    %v2637 = vlaneseq
    %v2638 = vshrl.u32 %v2637, 7
    %v2639 = vsub.s32 %v2636, %v2638
    %v2640 = vrot.slane %v2626, %v2639
    %v2641 = vcombine.low %v2633, %v2640
    %v2642 = vcombine.low %v1213, %v1217
    %v2643 = vcombine.low %v1221, %v1225
    %v2644 = vcombine.low %v1229, %v1233
    %v2645 = vcombine.low %v1237, %v1241
    %v2647 = vunpack.c.l.s4 1966171168
    %v2648 = vunpack.c.0.s8 %v2647
    %v2649 = vlaneseq
    %v2650 = vshrl.u32 %v2649, 7
    %v2651 = vsub.s32 %v2648, %v2650
    %v2652 = vrot.slane %v2642, %v2651
    %v2654 = vunpack.c.l.s4 1966171168
    %v2655 = vunpack.c.0.s8 %v2654
    %v2656 = vlaneseq
    %v2657 = vshrl.u32 %v2656, 7
    %v2658 = vsub.s32 %v2655, %v2657
    %v2659 = vrot.slane %v2643, %v2658
    %v2661 = vunpack.c.l.s4 1966171168
    %v2662 = vunpack.c.0.s8 %v2661
    %v2663 = vlaneseq
    %v2664 = vshrl.u32 %v2663, 7
    %v2665 = vsub.s32 %v2662, %v2664
    %v2666 = vrot.slane %v2644, %v2665
    %v2668 = vunpack.c.l.s4 1966171168
    %v2669 = vunpack.c.0.s8 %v2668
    %v2670 = vlaneseq
    %v2671 = vshrl.u32 %v2670, 7
    %v2672 = vsub.s32 %v2669, %v2671
    %v2673 = vrot.slane %v2645, %v2672
    %v2674 = vcombine.low %v2652, %v2659
    %v2675 = vcombine.low %v2666, %v2673
    %v2677 = vunpack.c.l.s4 1966171168
    %v2678 = vunpack.c.0.s8 %v2677
    %v2679 = vlaneseq
    %v2680 = vshrl.u32 %v2679, 7
    %v2681 = vsub.s32 %v2678, %v2680
    %v2682 = vrot.slane %v2674, %v2681
    %v2684 = vunpack.c.l.s4 1966171168
    %v2685 = vunpack.c.0.s8 %v2684
    %v2686 = vlaneseq
    %v2687 = vshrl.u32 %v2686, 7
    %v2688 = vsub.s32 %v2685, %v2687
    %v2689 = vrot.slane %v2675, %v2688
    %v2690 = vcombine.low %v2682, %v2689
    %v2691 = vcombine.low %v1245, %v1249
    %v2692 = vcombine.low %v1253, %v1257
    %v2693 = vcombine.low %v1261, %v1265
    %v2694 = vcombine.low %v1269, %v1273
    %v2696 = vunpack.c.l.s4 1966171168
    %v2697 = vunpack.c.0.s8 %v2696
    %v2698 = vlaneseq
    %v2699 = vshrl.u32 %v2698, 7
    %v2700 = vsub.s32 %v2697, %v2699
    %v2701 = vrot.slane %v2691, %v2700
    %v2703 = vunpack.c.l.s4 1966171168
    %v2704 = vunpack.c.0.s8 %v2703
    %v2705 = vlaneseq
    %v2706 = vshrl.u32 %v2705, 7
    %v2707 = vsub.s32 %v2704, %v2706
    %v2708 = vrot.slane %v2692, %v2707
    %v2710 = vunpack.c.l.s4 1966171168
    %v2711 = vunpack.c.0.s8 %v2710
    %v2712 = vlaneseq
    %v2713 = vshrl.u32 %v2712, 7
    %v2714 = vsub.s32 %v2711, %v2713
    %v2715 = vrot.slane %v2693, %v2714
    %v2717 = vunpack.c.l.s4 1966171168
    %v2718 = vunpack.c.0.s8 %v2717
    %v2719 = vlaneseq
    %v2720 = vshrl.u32 %v2719, 7
    %v2721 = vsub.s32 %v2718, %v2720
    %v2722 = vrot.slane %v2694, %v2721
    %v2723 = vcombine.low %v2701, %v2708
    %v2724 = vcombine.low %v2715, %v2722
    %v2726 = vunpack.c.l.s4 1966171168
    %v2727 = vunpack.c.0.s8 %v2726
    %v2728 = vlaneseq
    %v2729 = vshrl.u32 %v2728, 7
    %v2730 = vsub.s32 %v2727, %v2729
    %v2731 = vrot.slane %v2723, %v2730
    %v2733 = vunpack.c.l.s4 1966171168
    %v2734 = vunpack.c.0.s8 %v2733
    %v2735 = vlaneseq
    %v2736 = vshrl.u32 %v2735, 7
    %v2737 = vsub.s32 %v2734, %v2736
    %v2738 = vrot.slane %v2724, %v2737
    %v2739 = vcombine.low %v2731, %v2738
    %v2740 = vcombine.low %v1277, %v1281
    %v2741 = vcombine.low %v1285, %v1289
    %v2742 = vcombine.low %v1293, %v1297
    %v2743 = vcombine.low %v1301, %v1305
    %v2745 = vunpack.c.l.s4 1966171168
    %v2746 = vunpack.c.0.s8 %v2745
    %v2747 = vlaneseq
    %v2748 = vshrl.u32 %v2747, 7
    %v2749 = vsub.s32 %v2746, %v2748
    %v2750 = vrot.slane %v2740, %v2749
    %v2752 = vunpack.c.l.s4 1966171168
    %v2753 = vunpack.c.0.s8 %v2752
    %v2754 = vlaneseq
    %v2755 = vshrl.u32 %v2754, 7
    %v2756 = vsub.s32 %v2753, %v2755
    %v2757 = vrot.slane %v2741, %v2756
    %v2759 = vunpack.c.l.s4 1966171168
    %v2760 = vunpack.c.0.s8 %v2759
    %v2761 = vlaneseq
    %v2762 = vshrl.u32 %v2761, 7
    %v2763 = vsub.s32 %v2760, %v2762
    %v2764 = vrot.slane %v2742, %v2763
    %v2766 = vunpack.c.l.s4 1966171168
    %v2767 = vunpack.c.0.s8 %v2766
    %v2768 = vlaneseq
    %v2769 = vshrl.u32 %v2768, 7
    %v2770 = vsub.s32 %v2767, %v2769
    %v2771 = vrot.slane %v2743, %v2770
    %v2772 = vcombine.low %v2750, %v2757
    %v2773 = vcombine.low %v2764, %v2771
    %v2775 = vunpack.c.l.s4 1966171168
    %v2776 = vunpack.c.0.s8 %v2775
    %v2777 = vlaneseq
    %v2778 = vshrl.u32 %v2777, 7
    %v2779 = vsub.s32 %v2776, %v2778
    %v2780 = vrot.slane %v2772, %v2779
    %v2782 = vunpack.c.l.s4 1966171168
    %v2783 = vunpack.c.0.s8 %v2782
    %v2784 = vlaneseq
    %v2785 = vshrl.u32 %v2784, 7
    %v2786 = vsub.s32 %v2783, %v2785
    %v2787 = vrot.slane %v2773, %v2786
    %v2788 = vcombine.low %v2780, %v2787
    %v2789 = vcombine.low %v1309, %v1313
    %v2790 = vcombine.low %v1317, %v1321
    %v2791 = vcombine.low %v1325, %v1329
    %v2792 = vcombine.low %v1333, %v1337
    %v2794 = vunpack.c.l.s4 1966171168
    %v2795 = vunpack.c.0.s8 %v2794
    %v2796 = vlaneseq
    %v2797 = vshrl.u32 %v2796, 7
    %v2798 = vsub.s32 %v2795, %v2797
    %v2799 = vrot.slane %v2789, %v2798
    %v2801 = vunpack.c.l.s4 1966171168
    %v2802 = vunpack.c.0.s8 %v2801
    %v2803 = vlaneseq
    %v2804 = vshrl.u32 %v2803, 7
    %v2805 = vsub.s32 %v2802, %v2804
    %v2806 = vrot.slane %v2790, %v2805
    %v2808 = vunpack.c.l.s4 1966171168
    %v2809 = vunpack.c.0.s8 %v2808
    %v2810 = vlaneseq
    %v2811 = vshrl.u32 %v2810, 7
    %v2812 = vsub.s32 %v2809, %v2811
    %v2813 = vrot.slane %v2791, %v2812
    %v2815 = vunpack.c.l.s4 1966171168
    %v2816 = vunpack.c.0.s8 %v2815
    %v2817 = vlaneseq
    %v2818 = vshrl.u32 %v2817, 7
    %v2819 = vsub.s32 %v2816, %v2818
    %v2820 = vrot.slane %v2792, %v2819
    %v2821 = vcombine.low %v2799, %v2806
    %v2822 = vcombine.low %v2813, %v2820
    %v2824 = vunpack.c.l.s4 1966171168
    %v2825 = vunpack.c.0.s8 %v2824
    %v2826 = vlaneseq
    %v2827 = vshrl.u32 %v2826, 7
    %v2828 = vsub.s32 %v2825, %v2827
    %v2829 = vrot.slane %v2821, %v2828
    %v2831 = vunpack.c.l.s4 1966171168
    %v2832 = vunpack.c.0.s8 %v2831
    %v2833 = vlaneseq
    %v2834 = vshrl.u32 %v2833, 7
    %v2835 = vsub.s32 %v2832, %v2834
    %v2836 = vrot.slane %v2822, %v2835
    %v2837 = vcombine.low %v2829, %v2836
    %v2838 = vcombine.low %v1341, %v1345
    %v2839 = vcombine.low %v1349, %v1353
    %v2840 = vcombine.low %v1357, %v1361
    %v2841 = vcombine.low %v1365, %v1369
    %v2843 = vunpack.c.l.s4 1966171168
    %v2844 = vunpack.c.0.s8 %v2843
    %v2845 = vlaneseq
    %v2846 = vshrl.u32 %v2845, 7
    %v2847 = vsub.s32 %v2844, %v2846
    %v2848 = vrot.slane %v2838, %v2847
    %v2850 = vunpack.c.l.s4 1966171168
    %v2851 = vunpack.c.0.s8 %v2850
    %v2852 = vlaneseq
    %v2853 = vshrl.u32 %v2852, 7
    %v2854 = vsub.s32 %v2851, %v2853
    %v2855 = vrot.slane %v2839, %v2854
    %v2857 = vunpack.c.l.s4 1966171168
    %v2858 = vunpack.c.0.s8 %v2857
    %v2859 = vlaneseq
    %v2860 = vshrl.u32 %v2859, 7
    %v2861 = vsub.s32 %v2858, %v2860
    %v2862 = vrot.slane %v2840, %v2861
    %v2864 = vunpack.c.l.s4 1966171168
    %v2865 = vunpack.c.0.s8 %v2864
    %v2866 = vlaneseq
    %v2867 = vshrl.u32 %v2866, 7
    %v2868 = vsub.s32 %v2865, %v2867
    %v2869 = vrot.slane %v2841, %v2868
    %v2870 = vcombine.low %v2848, %v2855
    %v2871 = vcombine.low %v2862, %v2869
    %v2873 = vunpack.c.l.s4 1966171168
    %v2874 = vunpack.c.0.s8 %v2873
    %v2875 = vlaneseq
    %v2876 = vshrl.u32 %v2875, 7
    %v2877 = vsub.s32 %v2874, %v2876
    %v2878 = vrot.slane %v2870, %v2877
    %v2880 = vunpack.c.l.s4 1966171168
    %v2881 = vunpack.c.0.s8 %v2880
    %v2882 = vlaneseq
    %v2883 = vshrl.u32 %v2882, 7
    %v2884 = vsub.s32 %v2881, %v2883
    %v2885 = vrot.slane %v2871, %v2884
    %v2886 = vcombine.low %v2878, %v2885
    %v2887 = vcombine.low %v1373, %v1377
    %v2888 = vcombine.low %v1381, %v1385
    %v2889 = vcombine.low %v1389, %v1393
    %v2890 = vcombine.low %v1397, %v1401
    %v2892 = vunpack.c.l.s4 1966171168
    %v2893 = vunpack.c.0.s8 %v2892
    %v2894 = vlaneseq
    %v2895 = vshrl.u32 %v2894, 7
    %v2896 = vsub.s32 %v2893, %v2895
    %v2897 = vrot.slane %v2887, %v2896
    %v2899 = vunpack.c.l.s4 1966171168
    %v2900 = vunpack.c.0.s8 %v2899
    %v2901 = vlaneseq
    %v2902 = vshrl.u32 %v2901, 7
    %v2903 = vsub.s32 %v2900, %v2902
    %v2904 = vrot.slane %v2888, %v2903
    %v2906 = vunpack.c.l.s4 1966171168
    %v2907 = vunpack.c.0.s8 %v2906
    %v2908 = vlaneseq
    %v2909 = vshrl.u32 %v2908, 7
    %v2910 = vsub.s32 %v2907, %v2909
    %v2911 = vrot.slane %v2889, %v2910
    %v2913 = vunpack.c.l.s4 1966171168
    %v2914 = vunpack.c.0.s8 %v2913
    %v2915 = vlaneseq
    %v2916 = vshrl.u32 %v2915, 7
    %v2917 = vsub.s32 %v2914, %v2916
    %v2918 = vrot.slane %v2890, %v2917
    %v2919 = vcombine.low %v2897, %v2904
    %v2920 = vcombine.low %v2911, %v2918
    %v2922 = vunpack.c.l.s4 1966171168
    %v2923 = vunpack.c.0.s8 %v2922
    %v2924 = vlaneseq
    %v2925 = vshrl.u32 %v2924, 7
    %v2926 = vsub.s32 %v2923, %v2925
    %v2927 = vrot.slane %v2919, %v2926
    %v2929 = vunpack.c.l.s4 1966171168
    %v2930 = vunpack.c.0.s8 %v2929
    %v2931 = vlaneseq
    %v2932 = vshrl.u32 %v2931, 7
    %v2933 = vsub.s32 %v2930, %v2932
    %v2934 = vrot.slane %v2920, %v2933
    %v2935 = vcombine.low %v2927, %v2934
    %v2936 = vcombine.low %v1405, %v1409
    %v2937 = vcombine.low %v1413, %v1417
    %v2938 = vcombine.low %v1421, %v1425
    %v2939 = vcombine.low %v1429, %v1433
    %v2941 = vunpack.c.l.s4 1966171168
    %v2942 = vunpack.c.0.s8 %v2941
    %v2943 = vlaneseq
    %v2944 = vshrl.u32 %v2943, 7
    %v2945 = vsub.s32 %v2942, %v2944
    %v2946 = vrot.slane %v2936, %v2945
    %v2948 = vunpack.c.l.s4 1966171168
    %v2949 = vunpack.c.0.s8 %v2948
    %v2950 = vlaneseq
    %v2951 = vshrl.u32 %v2950, 7
    %v2952 = vsub.s32 %v2949, %v2951
    %v2953 = vrot.slane %v2937, %v2952
    %v2955 = vunpack.c.l.s4 1966171168
    %v2956 = vunpack.c.0.s8 %v2955
    %v2957 = vlaneseq
    %v2958 = vshrl.u32 %v2957, 7
    %v2959 = vsub.s32 %v2956, %v2958
    %v2960 = vrot.slane %v2938, %v2959
    %v2962 = vunpack.c.l.s4 1966171168
    %v2963 = vunpack.c.0.s8 %v2962
    %v2964 = vlaneseq
    %v2965 = vshrl.u32 %v2964, 7
    %v2966 = vsub.s32 %v2963, %v2965
    %v2967 = vrot.slane %v2939, %v2966
    %v2968 = vcombine.low %v2946, %v2953
    %v2969 = vcombine.low %v2960, %v2967
    %v2971 = vunpack.c.l.s4 1966171168
    %v2972 = vunpack.c.0.s8 %v2971
    %v2973 = vlaneseq
    %v2974 = vshrl.u32 %v2973, 7
    %v2975 = vsub.s32 %v2972, %v2974
    %v2976 = vrot.slane %v2968, %v2975
    %v2978 = vunpack.c.l.s4 1966171168
    %v2979 = vunpack.c.0.s8 %v2978
    %v2980 = vlaneseq
    %v2981 = vshrl.u32 %v2980, 7
    %v2982 = vsub.s32 %v2979, %v2981
    %v2983 = vrot.slane %v2969, %v2982
    %v2984 = vcombine.low %v2976, %v2983
    %v2985 = vcombine.low %v1437, %v1441
    %v2986 = vcombine.low %v1445, %v1449
    %v2987 = vcombine.low %v1453, %v1457
    %v2988 = vcombine.low %v1461, %v1465
    %v2990 = vunpack.c.l.s4 1966171168
    %v2991 = vunpack.c.0.s8 %v2990
    %v2992 = vlaneseq
    %v2993 = vshrl.u32 %v2992, 7
    %v2994 = vsub.s32 %v2991, %v2993
    %v2995 = vrot.slane %v2985, %v2994
    %v2997 = vunpack.c.l.s4 1966171168
    %v2998 = vunpack.c.0.s8 %v2997
    %v2999 = vlaneseq
    %v3000 = vshrl.u32 %v2999, 7
    %v3001 = vsub.s32 %v2998, %v3000
    %v3002 = vrot.slane %v2986, %v3001
    %v3004 = vunpack.c.l.s4 1966171168
    %v3005 = vunpack.c.0.s8 %v3004
    %v3006 = vlaneseq
    %v3007 = vshrl.u32 %v3006, 7
    %v3008 = vsub.s32 %v3005, %v3007
    %v3009 = vrot.slane %v2987, %v3008
    %v3011 = vunpack.c.l.s4 1966171168
    %v3012 = vunpack.c.0.s8 %v3011
    %v3013 = vlaneseq
    %v3014 = vshrl.u32 %v3013, 7
    %v3015 = vsub.s32 %v3012, %v3014
    %v3016 = vrot.slane %v2988, %v3015
    %v3017 = vcombine.low %v2995, %v3002
    %v3018 = vcombine.low %v3009, %v3016
    %v3020 = vunpack.c.l.s4 1966171168
    %v3021 = vunpack.c.0.s8 %v3020
    %v3022 = vlaneseq
    %v3023 = vshrl.u32 %v3022, 7
    %v3024 = vsub.s32 %v3021, %v3023
    %v3025 = vrot.slane %v3017, %v3024
    %v3027 = vunpack.c.l.s4 1966171168
    %v3028 = vunpack.c.0.s8 %v3027
    %v3029 = vlaneseq
    %v3030 = vshrl.u32 %v3029, 7
    %v3031 = vsub.s32 %v3028, %v3030
    %v3032 = vrot.slane %v3018, %v3031
    %v3033 = vcombine.low %v3025, %v3032
    %3034 = vset.pattern.permute.xlu0 0
    %3035 = vperm.xlu0 %3034, %v1514
    %v3036 = vpop.permute.xlu0 %3035
    %3037 = vset.pattern.permute.xlu0 0
    %3038 = vperm.xlu0 %3037, %v1563
    %v3039 = vpop.permute.xlu0 %3038
    %3040 = vset.pattern.permute.xlu0 0
    %3041 = vperm.xlu0 %3040, %v1612
    %v3042 = vpop.permute.xlu0 %3041
    %3043 = vset.pattern.permute.xlu0 0
    %3044 = vperm.xlu0 %3043, %v1661
    %v3045 = vpop.permute.xlu0 %3044
    %3046 = vset.pattern.permute.xlu0 0
    %3047 = vperm.xlu0 %3046, %v1710
    %v3048 = vpop.permute.xlu0 %3047
    %3049 = vset.pattern.permute.xlu0 0
    %3050 = vperm.xlu0 %3049, %v1759
    %v3051 = vpop.permute.xlu0 %3050
    %3052 = vset.pattern.permute.xlu0 0
    %3053 = vperm.xlu0 %3052, %v1808
    %v3054 = vpop.permute.xlu0 %3053
    %3055 = vset.pattern.permute.xlu0 0
    %3056 = vperm.xlu0 %3055, %v1857
    %v3057 = vpop.permute.xlu0 %3056
    %3058 = vset.pattern.permute.xlu0 0
    %3059 = vperm.xlu0 %3058, %v1906
    %v3060 = vpop.permute.xlu0 %3059
    %3061 = vset.pattern.permute.xlu0 0
    %3062 = vperm.xlu0 %3061, %v1955
    %v3063 = vpop.permute.xlu0 %3062
    %3064 = vset.pattern.permute.xlu0 0
    %3065 = vperm.xlu0 %3064, %v2004
    %v3066 = vpop.permute.xlu0 %3065
    %3067 = vset.pattern.permute.xlu0 0
    %3068 = vperm.xlu0 %3067, %v2053
    %v3069 = vpop.permute.xlu0 %3068
    %3070 = vset.pattern.permute.xlu0 0
    %3071 = vperm.xlu0 %3070, %v2102
    %v3072 = vpop.permute.xlu0 %3071
    %3073 = vset.pattern.permute.xlu0 0
    %3074 = vperm.xlu0 %3073, %v2151
    %v3075 = vpop.permute.xlu0 %3074
    %3076 = vset.pattern.permute.xlu0 0
    %3077 = vperm.xlu0 %3076, %v2200
    %v3078 = vpop.permute.xlu0 %3077
    %3079 = vset.pattern.permute.xlu0 0
    %3080 = vperm.xlu0 %3079, %v2249
    %v3081 = vpop.permute.xlu0 %3080
    %3082 = vset.pattern.permute.xlu0 0
    %3083 = vperm.xlu0 %3082, %v2298
    %v3084 = vpop.permute.xlu0 %3083
    %3085 = vset.pattern.permute.xlu0 0
    %3086 = vperm.xlu0 %3085, %v2347
    %v3087 = vpop.permute.xlu0 %3086
    %3088 = vset.pattern.permute.xlu0 0
    %3089 = vperm.xlu0 %3088, %v2396
    %v3090 = vpop.permute.xlu0 %3089
    %3091 = vset.pattern.permute.xlu0 0
    %3092 = vperm.xlu0 %3091, %v2445
    %v3093 = vpop.permute.xlu0 %3092
    %3094 = vset.pattern.permute.xlu0 0
    %3095 = vperm.xlu0 %3094, %v2494
    %v3096 = vpop.permute.xlu0 %3095
    %3097 = vset.pattern.permute.xlu0 0
    %3098 = vperm.xlu0 %3097, %v2543
    %v3099 = vpop.permute.xlu0 %3098
    %3100 = vset.pattern.permute.xlu0 0
    %3101 = vperm.xlu0 %3100, %v2592
    %v3102 = vpop.permute.xlu0 %3101
    %3103 = vset.pattern.permute.xlu0 0
    %3104 = vperm.xlu0 %3103, %v2641
    %v3105 = vpop.permute.xlu0 %3104
    %3106 = vset.pattern.permute.xlu0 0
    %3107 = vperm.xlu0 %3106, %v2690
    %v3108 = vpop.permute.xlu0 %3107
    %3109 = vset.pattern.permute.xlu0 0
    %3110 = vperm.xlu0 %3109, %v2739
    %v3111 = vpop.permute.xlu0 %3110
    %3112 = vset.pattern.permute.xlu0 0
    %3113 = vperm.xlu0 %3112, %v2788
    %v3114 = vpop.permute.xlu0 %3113
    %3115 = vset.pattern.permute.xlu0 0
    %3116 = vperm.xlu0 %3115, %v2837
    %v3117 = vpop.permute.xlu0 %3116
    %3118 = vset.pattern.permute.xlu0 0
    %3119 = vperm.xlu0 %3118, %v2886
    %v3120 = vpop.permute.xlu0 %3119
    %3121 = vset.pattern.permute.xlu0 0
    %3122 = vperm.xlu0 %3121, %v2935
    %v3123 = vpop.permute.xlu0 %3122
    %3124 = vset.pattern.permute.xlu0 0
    %3125 = vperm.xlu0 %3124, %v2984
    %v3126 = vpop.permute.xlu0 %3125
    %3127 = vset.pattern.permute.xlu0 0
    %3128 = vperm.xlu0 %3127, %v3033
    %v3129 = vpop.permute.xlu0 %3128
    %v3130 = vlaneseq
    %v3131 = vand.u32 %v3130, 127
    %v3132 = vlaneseq
    %v3133 = vshrl.u32 %v3132, 7
    %v3134 = vsub.s32 %v3131, %v3133
    %v3135 = vrot.slane %v3036, %v3134
    %v3136 = vadd.s32 %v3131, 4294967288
    %v3137 = vlaneseq
    %v3138 = vshrl.u32 %v3137, 7
    %v3139 = vsub.s32 %v3136, %v3138
    %v3140 = vrot.slane %v3039, %v3139
    %vm3141 = vcmask 130112
    %v3142 = vsel %vm3141, %v3140, %v3135
    %v3143 = vadd.s32 %v3131, 4294967280
    %v3144 = vlaneseq
    %v3145 = vshrl.u32 %v3144, 7
    %v3146 = vsub.s32 %v3143, %v3145
    %v3147 = vrot.slane %v3042, %v3146
    %vm3148 = vcmask 195712
    %v3149 = vsel %vm3148, %v3147, %v3142
    %v3150 = vadd.s32 %v3131, 4294967272
    %v3151 = vlaneseq
    %v3152 = vshrl.u32 %v3151, 7
    %v3153 = vsub.s32 %v3150, %v3152
    %v3154 = vrot.slane %v3045, %v3153
    %vm3155 = vcmask 261312
    %v3156 = vsel %vm3155, %v3154, %v3149
    %v3157 = vadd.s32 %v3131, 4294967264
    %v3158 = vlaneseq
    %v3159 = vshrl.u32 %v3158, 7
    %v3160 = vsub.s32 %v3157, %v3159
    %v3161 = vrot.slane %v3048, %v3160
    %vm3162 = vcmask 326912
    %v3163 = vsel %vm3162, %v3161, %v3156
    %v3164 = vadd.s32 %v3131, 4294967256
    %v3165 = vlaneseq
    %v3166 = vshrl.u32 %v3165, 7
    %v3167 = vsub.s32 %v3164, %v3166
    %v3168 = vrot.slane %v3051, %v3167
    %vm3169 = vcmask 392512
    %v3170 = vsel %vm3169, %v3168, %v3163
    %v3171 = vadd.s32 %v3131, 4294967248
    %v3172 = vlaneseq
    %v3173 = vshrl.u32 %v3172, 7
    %v3174 = vsub.s32 %v3171, %v3173
    %v3175 = vrot.slane %v3054, %v3174
    %vm3176 = vcmask 458112
    %v3177 = vsel %vm3176, %v3175, %v3170
    %v3178 = vadd.s32 %v3131, 4294967240
    %v3179 = vlaneseq
    %v3180 = vshrl.u32 %v3179, 7
    %v3181 = vsub.s32 %v3178, %v3180
    %v3182 = vrot.slane %v3057, %v3181
    %vm3183 = vcmask 523712
    %v3184 = vsel %vm3183, %v3182, %v3177
    %v3185 = vadd.s32 %v3131, 4294967232
    %v3186 = vlaneseq
    %v3187 = vshrl.u32 %v3186, 7
    %v3188 = vsub.s32 %v3185, %v3187
    %v3189 = vrot.slane %v3060, %v3188
    %vm3190 = vcmask 589312
    %v3191 = vsel %vm3190, %v3189, %v3184
    %v3192 = vadd.s32 %v3131, 4294967224
    %v3193 = vlaneseq
    %v3194 = vshrl.u32 %v3193, 7
    %v3195 = vsub.s32 %v3192, %v3194
    %v3196 = vrot.slane %v3063, %v3195
    %vm3197 = vcmask 654912
    %v3198 = vsel %vm3197, %v3196, %v3191
    %v3199 = vadd.s32 %v3131, 4294967216
    %v3200 = vlaneseq
    %v3201 = vshrl.u32 %v3200, 7
    %v3202 = vsub.s32 %v3199, %v3201
    %v3203 = vrot.slane %v3066, %v3202
    %vm3204 = vcmask 720512
    %v3205 = vsel %vm3204, %v3203, %v3198
    %v3206 = vadd.s32 %v3131, 4294967208
    %v3207 = vlaneseq
    %v3208 = vshrl.u32 %v3207, 7
    %v3209 = vsub.s32 %v3206, %v3208
    %v3210 = vrot.slane %v3069, %v3209
    %vm3211 = vcmask 786112
    %v3212 = vsel %vm3211, %v3210, %v3205
    %v3213 = vadd.s32 %v3131, 4294967200
    %v3214 = vlaneseq
    %v3215 = vshrl.u32 %v3214, 7
    %v3216 = vsub.s32 %v3213, %v3215
    %v3217 = vrot.slane %v3072, %v3216
    %vm3218 = vcmask 851712
    %v3219 = vsel %vm3218, %v3217, %v3212
    %v3220 = vadd.s32 %v3131, 4294967192
    %v3221 = vlaneseq
    %v3222 = vshrl.u32 %v3221, 7
    %v3223 = vsub.s32 %v3220, %v3222
    %v3224 = vrot.slane %v3075, %v3223
    %vm3225 = vcmask 917312
    %v3226 = vsel %vm3225, %v3224, %v3219
    %v3227 = vadd.s32 %v3131, 4294967184
    %v3228 = vlaneseq
    %v3229 = vshrl.u32 %v3228, 7
    %v3230 = vsub.s32 %v3227, %v3229
    %v3231 = vrot.slane %v3078, %v3230
    %vm3232 = vcmask 982912
    %v3233 = vsel %vm3232, %v3231, %v3226
    %v3234 = vadd.s32 %v3131, 4294967176
    %v3235 = vlaneseq
    %v3236 = vshrl.u32 %v3235, 7
    %v3237 = vsub.s32 %v3234, %v3236
    %v3238 = vrot.slane %v3081, %v3237
    %vm3239 = vcmask 1048512
    %v3240 = vsel %vm3239, %v3238, %v3233
    %v3241 = vlaneseq
    %v3242 = vshrl.u32 %v3241, 7
    %v3243 = vsub.s32 %v3131, %v3242
    %v3244 = vrot.slane %v3084, %v3243
    %v3245 = vlaneseq
    %v3246 = vshrl.u32 %v3245, 7
    %v3247 = vsub.s32 %v3136, %v3246
    %v3248 = vrot.slane %v3087, %v3247
    %v3249 = vsel %vm3141, %v3248, %v3244
    %v3250 = vlaneseq
    %v3251 = vshrl.u32 %v3250, 7
    %v3252 = vsub.s32 %v3143, %v3251
    %v3253 = vrot.slane %v3090, %v3252
    %v3254 = vsel %vm3148, %v3253, %v3249
    %v3255 = vlaneseq
    %v3256 = vshrl.u32 %v3255, 7
    %v3257 = vsub.s32 %v3150, %v3256
    %v3258 = vrot.slane %v3093, %v3257
    %v3259 = vsel %vm3155, %v3258, %v3254
    %v3260 = vlaneseq
    %v3261 = vshrl.u32 %v3260, 7
    %v3262 = vsub.s32 %v3157, %v3261
    %v3263 = vrot.slane %v3096, %v3262
    %v3264 = vsel %vm3162, %v3263, %v3259
    %v3265 = vlaneseq
    %v3266 = vshrl.u32 %v3265, 7
    %v3267 = vsub.s32 %v3164, %v3266
    %v3268 = vrot.slane %v3099, %v3267
    %v3269 = vsel %vm3169, %v3268, %v3264
    %v3270 = vlaneseq
    %v3271 = vshrl.u32 %v3270, 7
    %v3272 = vsub.s32 %v3171, %v3271
    %v3273 = vrot.slane %v3102, %v3272
    %v3274 = vsel %vm3176, %v3273, %v3269
    %v3275 = vlaneseq
    %v3276 = vshrl.u32 %v3275, 7
    %v3277 = vsub.s32 %v3178, %v3276
    %v3278 = vrot.slane %v3105, %v3277
    %v3279 = vsel %vm3183, %v3278, %v3274
    %v3280 = vlaneseq
    %v3281 = vshrl.u32 %v3280, 7
    %v3282 = vsub.s32 %v3185, %v3281
    %v3283 = vrot.slane %v3108, %v3282
    %v3284 = vsel %vm3190, %v3283, %v3279
    %v3285 = vlaneseq
    %v3286 = vshrl.u32 %v3285, 7
    %v3287 = vsub.s32 %v3192, %v3286
    %v3288 = vrot.slane %v3111, %v3287
    %v3289 = vsel %vm3197, %v3288, %v3284
    %v3290 = vlaneseq
    %v3291 = vshrl.u32 %v3290, 7
    %v3292 = vsub.s32 %v3199, %v3291
    %v3293 = vrot.slane %v3114, %v3292
    %v3294 = vsel %vm3204, %v3293, %v3289
    %v3295 = vlaneseq
    %v3296 = vshrl.u32 %v3295, 7
    %v3297 = vsub.s32 %v3206, %v3296
    %v3298 = vrot.slane %v3117, %v3297
    %v3299 = vsel %vm3211, %v3298, %v3294
    %v3300 = vlaneseq
    %v3301 = vshrl.u32 %v3300, 7
    %v3302 = vsub.s32 %v3213, %v3301
    %v3303 = vrot.slane %v3120, %v3302
    %v3304 = vsel %vm3218, %v3303, %v3299
    %v3305 = vlaneseq
    %v3306 = vshrl.u32 %v3305, 7
    %v3307 = vsub.s32 %v3220, %v3306
    %v3308 = vrot.slane %v3123, %v3307
    %v3309 = vsel %vm3225, %v3308, %v3304
    %v3310 = vlaneseq
    %v3311 = vshrl.u32 %v3310, 7
    %v3312 = vsub.s32 %v3227, %v3311
    %v3313 = vrot.slane %v3126, %v3312
    %v3314 = vsel %vm3232, %v3313, %v3309
    %v3315 = vlaneseq
    %v3316 = vshrl.u32 %v3315, 7
    %v3317 = vsub.s32 %v3234, %v3316
    %v3318 = vrot.slane %v3129, %v3317
    %v3319 = vsel %vm3239, %v3318, %v3314
    %v3320 = vcombine.low %v3240, %v3319
    %v3322 = vunpack.c.l.s4 1966171168
    %v3323 = vunpack.c.0.s8 %v3322
    %v3324 = vlaneseq
    %v3325 = vshrl.u32 %v3324, 7
    %v3326 = vsub.s32 %v3323, %v3325
    %v3327 = vrot.slane %v3320, %v3326
    %v3329 = vunpack.c.l.s4 1966171168
    %v3330 = vunpack.c.0.s8 %v3329
    %v3331 = vlaneseq
    %v3332 = vshrl.u32 %v3331, 7
    %v3333 = vsub.s32 %v3330, %v3332
    %v3334 = vrot.slane %v3327, %v3333
    %v3336 = vlaneseq
    %vm3337 = vcmp.ge.s32.totalorder %v3336, 0
    %vm3338 = vcmp.lt.s32.totalorder %v3336, 256
    %vm3339 = vmand %vm3337, %vm3338
    %3340 = vst.msk [vmem:[#allocation3] sm:$0x3] %vm3339, %v3334
    // Predicated region
    $region14: #{tpu_custom_call.1} parent=1 // pred_check
      _
    $region15: #{tpu_custom_call.1} parent=1 // pred_check_branch
      %3342 = sbr.rel (0) target = $region17
    $region16: #{tpu_custom_call.1} parent=1 // pred_region
      %s3344 = ssub.s32 32, 32
      %3345 = vsyncadd [#allocation4], %s3344
      %s3347 = sshll.u32 [#allocation3], 4
      %s3348 = int_to_ptr.vmem [resolvable:$true] %s3347
      %3350 = dma.vmem_to_hbm [thread:$0]  %s3348, 32, %s3, [#allocation4]
    $region17: #{tpu_custom_call.1} parent=1 // pred_fallthru
      _
    // Predicated region
    $region18: #{tpu_custom_call.1} parent=1 // pred_check
      _
    $region19: #{tpu_custom_call.1} parent=1 // pred_check_branch
      %3352 = sbr.rel (0) target = $region21
    $region20: #{tpu_custom_call.1} parent=1 // pred_region
      %3353 = dma.done [#allocation4], 32
    $region21: #{tpu_custom_call.1} parent=1 // pred_fallthru
      _
    %3354 = vsyncpa [#allocation4], 1

</llo_original>
